<compile_context>
chip_gen: v6e
topology: v6e:2x2x1
jax: 0.10.0
libtpu: 0.0.40
codegen_flags: <defaults>
</compile_context>

<pallas_src>
import functools
import math

import jax
import jax.numpy as jnp
from jax.experimental import pallas as pl
from jax.experimental.pallas import tpu as pltpu

_STATS_LANES = 128      # lane-dense slab: lane 0 = sample, 1 = log_prob, 2 = entropy
_NEG_INF = -1e30        # finite "-inf": exp underflows to 0, no NaN from 0 * (-inf)
_LN_EPS = 1e-5          # nn.LayerNorm default eps


def _make_kernel(class_counts, n_pad):
    """Build the fused kernel; class counts / widths are baked in as Python constants."""
    idx_bits = max(1, (n_pad - 1).bit_length())
    idx_mask = (1 << idx_bits) - 1            # e.g. 127 for n_pad = 128

    def kernel(x_ref, gum_ref,
               w1_ref, b1_ref, w2_ref, b2_ref,            # actor MLPs (stacked, bf16/f32)
               emb_ref, gamma_ref, beta_ref,               # embeddings + LayerNorm (stacked)
               wc1_ref, bc1_ref, wc2_ref, bc2_ref,         # critic MLP (lane padded)
               logits_ref, stats_ref, xout_ref, critic_ref):
        x = x_ref[...]                                      # [B, C] f32 residual stream
        B = x.shape[0]

        # ---- critic first: independent of the actor carry chain, so its two small
        #      matmuls overlap head 0's MXU work instead of serializing behind it ----
        hc = jnp.maximum(
            jnp.dot(x.astype(jnp.bfloat16), wc1_ref[...],
                    preferred_element_type=jnp.float32) + bc1_ref[...], 0.0)
        critic_ref[...] = (
            jnp.dot(hc.astype(jnp.bfloat16), wc2_ref[...],
                    preferred_element_type=jnp.float32) + bc2_ref[...])

        col = jax.lax.broadcasted_iota(jnp.int32, (B, n_pad), 1)
        lane = jax.lax.broadcasted_iota(jnp.int32, (B, _STATS_LANES), 1)

        # ---- static unroll over the tuple of Discrete heads (x carried as a value) ----
        for d, n in enumerate(class_counts):
            # actor MLP: Linear(C->C) -> ReLU -> Linear(C->Npad), bf16 weights on the MXU
            h = jnp.maximum(
                jnp.dot(x.astype(jnp.bfloat16), w1_ref[d],
                        preferred_element_type=jnp.float32) + b1_ref[d], 0.0)
            logits = jnp.dot(h.astype(jnp.bfloat16), w2_ref[d],
                             preferred_element_type=jnp.float32) + b2_ref[d]

            valid = col < n
            logits = jnp.where(valid, logits, _NEG_INF)     # mask the lane padding
            logits_ref[d] = logits

            # ---- stable softmax statistics (f32); reciprocal on the EUP slot ----
            m = jnp.max(logits, axis=-1, keepdims=True)
            z = logits - m
            ez = jnp.where(valid, jnp.exp(z), 0.0)
            denom = jnp.sum(ez, axis=-1, keepdims=True)
            p = ez * pl.reciprocal(denom, approx=True)
            log_p = z - jnp.log(denom)
            ent = -jnp.sum(jnp.where(valid, p * log_p, 0.0), axis=-1, keepdims=True)

            # ---- Gumbel-max sampling with ONE cross-lane reduce: order-preserving
            #      int32 key of y, complemented lane index packed in the low bits
            #      (ties break to the lowest index, deterministically) ----
            y = logits + gum_ref[d]
            ybits = pltpu.bitcast(y, jnp.int32)
            key = jnp.where(ybits < 0, ybits ^ jnp.int32(0x7FFFFFFF), ybits)
            packed = (key & jnp.int32(~idx_mask)) | (jnp.int32(idx_mask) - col)
            packed_max = jnp.max(packed, axis=-1, keepdims=True)
            sample = jnp.int32(idx_mask) - (packed_max & jnp.int32(idx_mask))   # [B,1] i32

            one_hot = (col == sample).astype(jnp.float32)                       # exactly one lane
            logp = jnp.sum(one_hot * jnp.where(valid, log_p, 0.0),
                           axis=-1, keepdims=True)

            # ---- embedding lookup (one-hot matmul on MXU) + LayerNorm + residual ----
            emb = jnp.dot(one_hot.astype(jnp.bfloat16), emb_ref[d],
                          preferred_element_type=jnp.float32)                   # [B,C]
            mean = jnp.mean(emb, axis=-1, keepdims=True)
            var = jnp.mean((emb - mean) ** 2, axis=-1, keepdims=True)
            e_norm = (emb - mean) * jax.lax.rsqrt(var + _LN_EPS)
            x = x + gamma_ref[d] * e_norm + beta_ref[d]

            # ---- lane-dense per-decoder stats slab: one unmasked [B,128] store ----
            # (sample stored as f32 -- exact for class counts < 2**24)
            stats_ref[d] = jnp.where(
                lane == 0, sample.astype(jnp.float32),
                jnp.where(lane == 1, logp,
                          jnp.where(lane == 2, ent, 0.0)))

        xout_ref[...] = x

    return kernel


def _fused_forward(params, x, key, *, class_counts, n_pad):
    """Whole AutoActorCriticDecoder forward in one jitted, gridless pallas_call."""
    n_dec = len(class_counts)
    B, C = x.shape

    gumbel = jax.random.gumbel(key, (n_dec, B, n_pad), dtype=jnp.float32)

    vmem = pl.BlockSpec(memory_space=pltpu.MemorySpace.VMEM)   # whole array resident in VMEM

    logits_pad, stats, x_out, critic_pad = pl.pallas_call(
        _make_kernel(class_counts, n_pad),
        out_shape=(
            jax.ShapeDtypeStruct((n_dec, B, n_pad), jnp.float32),       # logits (padded)
            jax.ShapeDtypeStruct((n_dec, B, _STATS_LANES), jnp.float32),  # stats slab
            jax.ShapeDtypeStruct((B, C), jnp.float32),                  # final x
            jax.ShapeDtypeStruct((B, _STATS_LANES), jnp.float32),       # critic (lane 0)
        ),
        in_specs=[vmem] * 13,
        out_specs=(vmem, vmem, vmem, vmem),
        compiler_params=pltpu.CompilerParams(
            # whole working set (all stacked bf16 weights + activations) is ~0.1 MiB here;
            # 32 MiB is within the default scoped budget on v5e/v6e/v7x. Re-derive if
            # channels / head count scale (v7x has only 64 MiB physical VMEM).
            vmem_limit_bytes=32 * 1024 * 1024),
    )(x, gumbel,
      params["w1"], params["b1"], params["w2"], params["b2"],
      params["emb"], params["gamma"], params["beta"],
      params["wc1"], params["bc1"], params["wc2"], params["bc2"])

    actor_out = []
    for d, n in enumerate(class_counts):
        actor_out.append({
            "sample": stats[d, :, 0].astype(jnp.int32),
            "log_prob": stats[d, :, 1],
            "entropy": stats[d, :, 2],
            "logits": logits_pad[d, :, :n],
        })
    return {"actor": actor_out, "critic": critic_pad[:, 0]}, x_out


def _init_params(key, channels, class_counts, n_pad):
    """Stacked, lane-padded parameters for every actor head + the critic head."""
    n_dec = len(class_counts)
    keys = jax.random.split(key, 3 * n_dec + 2)
    k_iter = iter(keys)
    scale = 1.0 / math.sqrt(channels)

    w1, w2, emb = [], [], []
    for n in class_counts:
        w1.append(jax.random.normal(next(k_iter), (channels, channels), jnp.float32) * scale)
        w2_n = jax.random.normal(next(k_iter), (channels, n), jnp.float32) * scale
        w2.append(jnp.pad(w2_n, ((0, 0), (0, n_pad - n))))
        emb_n = jax.random.normal(next(k_iter), (n, channels), jnp.float32) * 0.02
        emb.append(jnp.pad(emb_n, ((0, n_pad - n), (0, 0))))

    wc1 = jax.random.normal(next(k_iter), (channels, channels), jnp.float32) * scale
    wc2 = jax.random.normal(next(k_iter), (channels, 1), jnp.float32) * scale

    return {
        # matmul weights in bf16 (MXU-native, halves resident weight bytes);
        # biases / LayerNorm params stay f32 (all element-wise math is f32)
        "w1": jnp.stack(w1).astype(jnp.bfloat16),
        "b1": jnp.zeros((n_dec, 1, channels), jnp.float32),
        "w2": jnp.stack(w2).astype(jnp.bfloat16),
        "b2": jnp.zeros((n_dec, 1, n_pad), jnp.float32),
        "emb": jnp.stack(emb).astype(jnp.bfloat16),
        "gamma": jnp.ones((n_dec, 1, channels), jnp.float32),
        "beta": jnp.zeros((n_dec, 1, channels), jnp.float32),
        "wc1": wc1.astype(jnp.bfloat16),
        "bc1": jnp.zeros((1, channels), jnp.float32),
        "wc2": jnp.pad(wc2, ((0, 0), (0, _STATS_LANES - 1))).astype(jnp.bfloat16),
        "bc2": jnp.zeros((1, _STATS_LANES), jnp.float32),
    }


class AutoActorCriticDecoderPallas:
    """AutoActorCriticDecoder with actor space = Tuple(Discrete(n) for n in class_counts)."""

    def __init__(self, key, channels, class_counts):
        self.channels = int(channels)
        self.class_counts = tuple(int(n) for n in class_counts)
        assert max(self.class_counts) < (1 << 24)   # samples round-trip exactly through f32
        # pad every Discrete(n) head to a common, lane-dense (multiple-of-128) width
        self.n_pad = 128 * max(1, -(-max(self.class_counts) // 128))
        self.params = _init_params(key, self.channels, self.class_counts, self.n_pad)
        self._forward = jax.jit(functools.partial(
            _fused_forward, class_counts=self.class_counts, n_pad=self.n_pad))

    def __call__(self, x, key):
        return self._forward(self.params, x, key)


if __name__ == "__main__":
    key = jax.random.PRNGKey(0)
    k_param, k_x, k_sample = jax.random.split(key, 3)

    B, C = 8, 32                        # batch, config.channels
    class_counts = (16, 12, 7)          # Tuple((Discrete(16), Discrete(12), Discrete(7)))

    decoder = AutoActorCriticDecoderPallas(k_param, C, class_counts)
    x = jax.random.normal(k_x, (B, C), jnp.float32)

    out, x_final = decoder(x, k_sample)
    out = jax.block_until_ready(out)
    x_final = jax.block_until_ready(x_final)

    # light sanity checks
    assert x_final.shape == (B, C)
    assert out["critic"].shape == (B,)
    for head, n in zip(out["actor"], class_counts):
        assert head["logits"].shape == (B, n)
        assert head["sample"].shape == (B,)
        assert head["log_prob"].shape == (B,)
        assert head["entropy"].shape == (B,)
        assert int(jnp.min(head["sample"])) >= 0
        assert int(jnp.max(head["sample"])) < n
        assert bool(jnp.all(jnp.isfinite(head["logits"])))
        assert bool(jnp.all(head["entropy"] >= 0.0))
        assert bool(jnp.all(head["log_prob"] <= 1e-6))
    assert bool(jnp.all(jnp.isfinite(x_final)))
    assert bool(jnp.all(jnp.isfinite(out["critic"])))
    print("KERNEL_OK")
</pallas_src>

<mosaic_0001>
module attributes {stable_mosaic.version = 11 : i64} {
  func.func @kernel(%arg0: memref<8x32xf32, #tpu.memory_space<vmem>>, %arg1: memref<3x8x128xf32, #tpu.memory_space<vmem>>, %arg2: memref<3x32x32xbf16, #tpu.memory_space<vmem>>, %arg3: memref<3x1x32xf32, #tpu.memory_space<vmem>>, %arg4: memref<3x32x128xbf16, #tpu.memory_space<vmem>>, %arg5: memref<3x1x128xf32, #tpu.memory_space<vmem>>, %arg6: memref<3x128x32xbf16, #tpu.memory_space<vmem>>, %arg7: memref<3x1x32xf32, #tpu.memory_space<vmem>>, %arg8: memref<3x1x32xf32, #tpu.memory_space<vmem>>, %arg9: memref<32x32xbf16, #tpu.memory_space<vmem>>, %arg10: memref<1x32xf32, #tpu.memory_space<vmem>>, %arg11: memref<32x128xbf16, #tpu.memory_space<vmem>>, %arg12: memref<1x128xf32, #tpu.memory_space<vmem>>, %arg13: memref<3x8x128xf32, #tpu.memory_space<vmem>>, %arg14: memref<3x8x128xf32, #tpu.memory_space<vmem>>, %arg15: memref<8x32xf32, #tpu.memory_space<vmem>>, %arg16: memref<8x128xf32, #tpu.memory_space<vmem>>) attributes {dimension_semantics = [], scalar_prefetch = 0 : i64, scratch_operands = 0 : i64, tpu.core_type = #tpu.core_type<tc>} {
    %c0 = arith.constant 0 : index
    %c0_0 = arith.constant 0 : index
    %0 = vector.load %arg0[%c0, %c0_0] : memref<8x32xf32, #tpu.memory_space<vmem>>, vector<8x32xf32>
    %1 = arith.truncf %0 : vector<8x32xf32> to vector<8x32xbf16>
    %c0_1 = arith.constant 0 : index
    %c0_2 = arith.constant 0 : index
    %2 = vector.load %arg9[%c0_1, %c0_2] : memref<32x32xbf16, #tpu.memory_space<vmem>>, vector<32x32xbf16>
    %cst = arith.constant dense<0.000000e+00> : vector<8x32xf32>
    %3 = tpu.matmul %1, %2, %cst {dimension_numbers = #tpu.dot_dimension_numbers<[1], [0], [0], [1], [0, 0, 1, 1], [], []>} : vector<8x32xbf16>, vector<32x32xbf16>, vector<8x32xf32> -> vector<8x32xf32>
    %c0_3 = arith.constant 0 : index
    %c0_4 = arith.constant 0 : index
    %4 = vector.load %arg10[%c0_3, %c0_4] : memref<1x32xf32, #tpu.memory_space<vmem>>, vector<1x32xf32>
    %5 = vector.broadcast %4 : vector<1x32xf32> to vector<8x32xf32>
    %6 = arith.addf %3, %5 : vector<8x32xf32>
    %cst_5 = arith.constant 0.000000e+00 : f32
    %7 = vector.broadcast %cst_5 : f32 to vector<8x32xf32>
    %8 = arith.maximumf %6, %7 : vector<8x32xf32>
    %9 = arith.truncf %8 : vector<8x32xf32> to vector<8x32xbf16>
    %c0_6 = arith.constant 0 : index
    %c0_7 = arith.constant 0 : index
    %10 = vector.load %arg11[%c0_6, %c0_7] : memref<32x128xbf16, #tpu.memory_space<vmem>>, vector<32x128xbf16>
    %cst_8 = arith.constant dense<0.000000e+00> : vector<8x128xf32>
    %11 = tpu.matmul %9, %10, %cst_8 {dimension_numbers = #tpu.dot_dimension_numbers<[1], [0], [0], [1], [0, 0, 1, 1], [], []>} : vector<8x32xbf16>, vector<32x128xbf16>, vector<8x128xf32> -> vector<8x128xf32>
    %c0_9 = arith.constant 0 : index
    %c0_10 = arith.constant 0 : index
    %12 = vector.load %arg12[%c0_9, %c0_10] : memref<1x128xf32, #tpu.memory_space<vmem>>, vector<1x128xf32>
    %13 = vector.broadcast %12 : vector<1x128xf32> to vector<8x128xf32>
    %14 = arith.addf %11, %13 : vector<8x128xf32>
    %c0_11 = arith.constant 0 : index
    %c0_12 = arith.constant 0 : index
    %15 = vector.load %arg16[%c0_11, %c0_12] : memref<8x128xf32, #tpu.memory_space<vmem>>, vector<8x128xf32>
    tpu.vector_store %arg16[%c0_11, %c0_12], %14 {strides = array<i32>} : memref<8x128xf32, #tpu.memory_space<vmem>>, vector<8x128xf32>,
    %16 = tpu.iota {dimensions = array<i32: 1>} : vector<8x128xi32>
    %17 = tpu.iota {dimensions = array<i32: 1>} : vector<8x128xi32>
    %18 = arith.truncf %0 : vector<8x32xf32> to vector<8x32xbf16>
    %c0_13 = arith.constant 0 : index
    %c0_14 = arith.constant 0 : index
    %c0_15 = arith.constant 0 : index
    %19 = vector.load %arg2[%c0_13, %c0_14, %c0_15] : memref<3x32x32xbf16, #tpu.memory_space<vmem>>, vector<1x32x32xbf16>
    %20 = vector.shape_cast %19 : vector<1x32x32xbf16> to vector<32x32xbf16>
    %cst_16 = arith.constant dense<0.000000e+00> : vector<8x32xf32>
    %21 = tpu.matmul %18, %20, %cst_16 {dimension_numbers = #tpu.dot_dimension_numbers<[1], [0], [0], [1], [0, 0, 1, 1], [], []>} : vector<8x32xbf16>, vector<32x32xbf16>, vector<8x32xf32> -> vector<8x32xf32>
    %c0_17 = arith.constant 0 : index
    %c0_18 = arith.constant 0 : index
    %c0_19 = arith.constant 0 : index
    %22 = vector.load %arg3[%c0_17, %c0_18, %c0_19] : memref<3x1x32xf32, #tpu.memory_space<vmem>>, vector<1x1x32xf32>
    %23 = vector.shape_cast %22 : vector<1x1x32xf32> to vector<1x32xf32>
    %24 = vector.broadcast %23 : vector<1x32xf32> to vector<8x32xf32>
    %25 = arith.addf %21, %24 : vector<8x32xf32>
    %cst_20 = arith.constant 0.000000e+00 : f32
    %26 = vector.broadcast %cst_20 : f32 to vector<8x32xf32>
    %27 = arith.maximumf %25, %26 : vector<8x32xf32>
    %28 = arith.truncf %27 : vector<8x32xf32> to vector<8x32xbf16>
    %c0_21 = arith.constant 0 : index
    %c0_22 = arith.constant 0 : index
    %c0_23 = arith.constant 0 : index
    %29 = vector.load %arg4[%c0_21, %c0_22, %c0_23] : memref<3x32x128xbf16, #tpu.memory_space<vmem>>, vector<1x32x128xbf16>
    %30 = vector.shape_cast %29 : vector<1x32x128xbf16> to vector<32x128xbf16>
    %cst_24 = arith.constant dense<0.000000e+00> : vector<8x128xf32>
    %31 = tpu.matmul %28, %30, %cst_24 {dimension_numbers = #tpu.dot_dimension_numbers<[1], [0], [0], [1], [0, 0, 1, 1], [], []>} : vector<8x32xbf16>, vector<32x128xbf16>, vector<8x128xf32> -> vector<8x128xf32>
    %c0_25 = arith.constant 0 : index
    %c0_26 = arith.constant 0 : index
    %c0_27 = arith.constant 0 : index
    %32 = vector.load %arg5[%c0_25, %c0_26, %c0_27] : memref<3x1x128xf32, #tpu.memory_space<vmem>>, vector<1x1x128xf32>
    %33 = vector.shape_cast %32 : vector<1x1x128xf32> to vector<1x128xf32>
    %34 = vector.broadcast %33 : vector<1x128xf32> to vector<8x128xf32>
    %35 = arith.addf %31, %34 : vector<8x128xf32>
    %c16_i32 = arith.constant 16 : i32
    %36 = vector.broadcast %c16_i32 : i32 to vector<8x128xi32>
    %37 = arith.cmpi slt, %16, %36 : vector<8x128xi32>
    %cst_28 = arith.constant -1.000000e+30 : f32
    %38 = vector.broadcast %cst_28 : f32 to vector<8x128xf32>
    %39 = arith.select %37, %35, %38 : vector<8x128xi1>, vector<8x128xf32>
    %c0_29 = arith.constant 0 : index
    %c0_30 = arith.constant 0 : index
    %c0_31 = arith.constant 0 : index
    %40 = vector.load %arg13[%c0_29, %c0_30, %c0_31] : memref<3x8x128xf32, #tpu.memory_space<vmem>>, vector<1x8x128xf32>
    %41 = vector.shape_cast %40 : vector<1x8x128xf32> to vector<8x128xf32>
    %42 = vector.shape_cast %39 : vector<8x128xf32> to vector<1x8x128xf32>
    tpu.vector_store %arg13[%c0_29, %c0_30, %c0_31], %42 {strides = array<i32>} : memref<3x8x128xf32, #tpu.memory_space<vmem>>, vector<1x8x128xf32>,
    %cst_32 = arith.constant dense<0xFF800000> : vector<8xf32>
    %43 = vector.multi_reduction <maximumf>, %39, %cst_32 [1] : vector<8x128xf32> to vector<8xf32>
    %44 = vector.shape_cast %43 : vector<8xf32> to vector<8x1xf32>
    %45 = vector.broadcast %44 : vector<8x1xf32> to vector<8x128xf32>
    %46 = arith.subf %39, %45 : vector<8x128xf32>
    %47 = math.exp %46 : vector<8x128xf32>
    %cst_33 = arith.constant 0.000000e+00 : f32
    %48 = vector.broadcast %cst_33 : f32 to vector<8x128xf32>
    %49 = arith.select %37, %47, %48 : vector<8x128xi1>, vector<8x128xf32>
    %cst_34 = arith.constant dense<0.000000e+00> : vector<8xf32>
    %50 = vector.multi_reduction <add>, %49, %cst_34 [1] : vector<8x128xf32> to vector<8xf32>
    %51 = vector.shape_cast %50 : vector<8xf32> to vector<8x1xf32>
    %52 = tpu.reciprocal %51 {approx = true} : vector<8x1xf32> -> vector<8x1xf32>
    %53 = vector.broadcast %52 : vector<8x1xf32> to vector<8x128xf32>
    %54 = arith.mulf %49, %53 : vector<8x128xf32>
    %55 = math.log %51 : vector<8x1xf32>
    %56 = vector.broadcast %55 : vector<8x1xf32> to vector<8x128xf32>
    %57 = arith.subf %46, %56 : vector<8x128xf32>
    %58 = arith.mulf %54, %57 : vector<8x128xf32>
    %cst_35 = arith.constant 0.000000e+00 : f32
    %59 = vector.broadcast %cst_35 : f32 to vector<8x128xf32>
    %60 = arith.select %37, %58, %59 : vector<8x128xi1>, vector<8x128xf32>
    %cst_36 = arith.constant dense<0.000000e+00> : vector<8xf32>
    %61 = vector.multi_reduction <add>, %60, %cst_36 [1] : vector<8x128xf32> to vector<8xf32>
    %62 = vector.shape_cast %61 : vector<8xf32> to vector<8x1xf32>
    %cst_37 = arith.constant 0.000000e+00 : f32
    %63 = vector.broadcast %cst_37 : f32 to vector<8x1xf32>
    %64 = arith.subf %63, %62 : vector<8x1xf32>
    %c0_38 = arith.constant 0 : index
    %c0_39 = arith.constant 0 : index
    %c0_40 = arith.constant 0 : index
    %65 = vector.load %arg1[%c0_38, %c0_39, %c0_40] : memref<3x8x128xf32, #tpu.memory_space<vmem>>, vector<1x8x128xf32>
    %66 = vector.shape_cast %65 : vector<1x8x128xf32> to vector<8x128xf32>
    %67 = arith.addf %39, %66 : vector<8x128xf32>
    %68 = tpu.bitcast %67 : vector<8x128xf32> -> vector<8x128xi32>
    %c0_i32 = arith.constant 0 : i32
    %69 = vector.broadcast %c0_i32 : i32 to vector<8x128xi32>
    %70 = arith.cmpi slt, %68, %69 : vector<8x128xi32>
    %c2147483647_i32 = arith.constant 2147483647 : i32
    %71 = vector.broadcast %c2147483647_i32 : i32 to vector<8x128xi32>
    %72 = arith.xori %68, %71 : vector<8x128xi32>
    %73 = arith.select %70, %72, %68 : vector<8x128xi1>, vector<8x128xi32>
    %c-128_i32 = arith.constant -128 : i32
    %74 = vector.broadcast %c-128_i32 : i32 to vector<8x128xi32>
    %75 = arith.andi %73, %74 : vector<8x128xi32>
    %c127_i32 = arith.constant 127 : i32
    %76 = vector.broadcast %c127_i32 : i32 to vector<8x128xi32>
    %77 = arith.subi %76, %16 : vector<8x128xi32>
    %78 = arith.ori %75, %77 : vector<8x128xi32>
    %cst_41 = arith.constant dense<-2147483648> : vector<8xi32>
    %79 = vector.multi_reduction <maxsi>, %78, %cst_41 [1] : vector<8x128xi32> to vector<8xi32>
    %80 = vector.shape_cast %79 : vector<8xi32> to vector<8x1xi32>
    %c127_i32_42 = arith.constant 127 : i32
    %81 = vector.broadcast %c127_i32_42 : i32 to vector<8x1xi32>
    %82 = arith.andi %80, %81 : vector<8x1xi32>
    %c127_i32_43 = arith.constant 127 : i32
    %83 = vector.broadcast %c127_i32_43 : i32 to vector<8x1xi32>
    %84 = arith.subi %83, %82 : vector<8x1xi32>
    %85 = vector.broadcast %84 : vector<8x1xi32> to vector<8x128xi32>
    %86 = arith.cmpi eq, %16, %85 : vector<8x128xi32>
    %87 = arith.extui %86 : vector<8x128xi1> to vector<8x128xi32>
    %88 = arith.sitofp %87 : vector<8x128xi32> to vector<8x128xf32>
    %cst_44 = arith.constant 0.000000e+00 : f32
    %89 = vector.broadcast %cst_44 : f32 to vector<8x128xf32>
    %90 = arith.select %37, %57, %89 : vector<8x128xi1>, vector<8x128xf32>
    %91 = arith.mulf %88, %90 : vector<8x128xf32>
    %cst_45 = arith.constant dense<0.000000e+00> : vector<8xf32>
    %92 = vector.multi_reduction <add>, %91, %cst_45 [1] : vector<8x128xf32> to vector<8xf32>
    %93 = vector.shape_cast %92 : vector<8xf32> to vector<8x1xf32>
    %94 = arith.truncf %88 : vector<8x128xf32> to vector<8x128xbf16>
    %c0_46 = arith.constant 0 : index
    %c0_47 = arith.constant 0 : index
    %c0_48 = arith.constant 0 : index
    %95 = vector.load %arg6[%c0_46, %c0_47, %c0_48] : memref<3x128x32xbf16, #tpu.memory_space<vmem>>, vector<1x128x32xbf16>
    %96 = vector.shape_cast %95 : vector<1x128x32xbf16> to vector<128x32xbf16>
    %cst_49 = arith.constant dense<0.000000e+00> : vector<8x32xf32>
    %97 = tpu.matmul %94, %96, %cst_49 {dimension_numbers = #tpu.dot_dimension_numbers<[1], [0], [0], [1], [0, 0, 1, 1], [], []>} : vector<8x128xbf16>, vector<128x32xbf16>, vector<8x32xf32> -> vector<8x32xf32>
    %cst_50 = arith.constant dense<0.000000e+00> : vector<8xf32>
    %98 = vector.multi_reduction <add>, %97, %cst_50 [1] : vector<8x32xf32> to vector<8xf32>
    %99 = vector.shape_cast %98 : vector<8xf32> to vector<8x1xf32>
    %cst_51 = arith.constant 3.200000e+01 : f32
    %100 = vector.broadcast %cst_51 : f32 to vector<8x1xf32>
    %101 = arith.divf %99, %100 : vector<8x1xf32>
    %102 = vector.broadcast %101 : vector<8x1xf32> to vector<8x32xf32>
    %103 = arith.subf %97, %102 : vector<8x32xf32>
    %104 = arith.mulf %103, %103 : vector<8x32xf32>
    %cst_52 = arith.constant dense<0.000000e+00> : vector<8xf32>
    %105 = vector.multi_reduction <add>, %104, %cst_52 [1] : vector<8x32xf32> to vector<8xf32>
    %106 = vector.shape_cast %105 : vector<8xf32> to vector<8x1xf32>
    %cst_53 = arith.constant 3.200000e+01 : f32
    %107 = vector.broadcast %cst_53 : f32 to vector<8x1xf32>
    %108 = arith.divf %106, %107 : vector<8x1xf32>
    %109 = vector.broadcast %101 : vector<8x1xf32> to vector<8x32xf32>
    %110 = arith.subf %97, %109 : vector<8x32xf32>
    %cst_54 = arith.constant 9.99999974E-6 : f32
    %111 = vector.broadcast %cst_54 : f32 to vector<8x1xf32>
    %112 = arith.addf %108, %111 : vector<8x1xf32>
    %113 = math.rsqrt %112 : vector<8x1xf32>
    %114 = vector.broadcast %113 : vector<8x1xf32> to vector<8x32xf32>
    %115 = arith.mulf %110, %114 : vector<8x32xf32>
    %c0_55 = arith.constant 0 : index
    %c0_56 = arith.constant 0 : index
    %c0_57 = arith.constant 0 : index
    %116 = vector.load %arg7[%c0_55, %c0_56, %c0_57] : memref<3x1x32xf32, #tpu.memory_space<vmem>>, vector<1x1x32xf32>
    %117 = vector.shape_cast %116 : vector<1x1x32xf32> to vector<1x32xf32>
    %118 = vector.broadcast %117 : vector<1x32xf32> to vector<8x32xf32>
    %119 = arith.mulf %118, %115 : vector<8x32xf32>
    %120 = arith.addf %0, %119 : vector<8x32xf32>
    %c0_58 = arith.constant 0 : index
    %c0_59 = arith.constant 0 : index
    %c0_60 = arith.constant 0 : index
    %121 = vector.load %arg8[%c0_58, %c0_59, %c0_60] : memref<3x1x32xf32, #tpu.memory_space<vmem>>, vector<1x1x32xf32>
    %122 = vector.shape_cast %121 : vector<1x1x32xf32> to vector<1x32xf32>
    %123 = vector.broadcast %122 : vector<1x32xf32> to vector<8x32xf32>
    %124 = arith.addf %120, %123 : vector<8x32xf32>
    %c0_i32_61 = arith.constant 0 : i32
    %125 = vector.broadcast %c0_i32_61 : i32 to vector<8x128xi32>
    %126 = arith.cmpi eq, %17, %125 : vector<8x128xi32>
    %127 = arith.sitofp %84 : vector<8x1xi32> to vector<8x1xf32>
    %c1_i32 = arith.constant 1 : i32
    %128 = vector.broadcast %c1_i32 : i32 to vector<8x128xi32>
    %129 = arith.cmpi eq, %17, %128 : vector<8x128xi32>
    %c2_i32 = arith.constant 2 : i32
    %130 = vector.broadcast %c2_i32 : i32 to vector<8x128xi32>
    %131 = arith.cmpi eq, %17, %130 : vector<8x128xi32>
    %cst_62 = arith.constant 0.000000e+00 : f32
    %132 = vector.shape_cast %64 : vector<8x1xf32> to vector<8x1xf32>
    %133 = vector.broadcast %132 : vector<8x1xf32> to vector<8x128xf32>
    %134 = vector.broadcast %cst_62 : f32 to vector<8x128xf32>
    %135 = arith.select %131, %133, %134 : vector<8x128xi1>, vector<8x128xf32>
    %136 = vector.shape_cast %93 : vector<8x1xf32> to vector<8x1xf32>
    %137 = vector.broadcast %136 : vector<8x1xf32> to vector<8x128xf32>
    %138 = arith.select %129, %137, %135 : vector<8x128xi1>, vector<8x128xf32>
    %139 = vector.shape_cast %127 : vector<8x1xf32> to vector<8x1xf32>
    %140 = vector.broadcast %139 : vector<8x1xf32> to vector<8x128xf32>
    %141 = arith.select %126, %140, %138 : vector<8x128xi1>, vector<8x128xf32>
    %c0_63 = arith.constant 0 : index
    %c0_64 = arith.constant 0 : index
    %c0_65 = arith.constant 0 : index
    %142 = vector.load %arg14[%c0_63, %c0_64, %c0_65] : memref<3x8x128xf32, #tpu.memory_space<vmem>>, vector<1x8x128xf32>
    %143 = vector.shape_cast %142 : vector<1x8x128xf32> to vector<8x128xf32>
    %144 = vector.shape_cast %141 : vector<8x128xf32> to vector<1x8x128xf32>
    tpu.vector_store %arg14[%c0_63, %c0_64, %c0_65], %144 {strides = array<i32>} : memref<3x8x128xf32, #tpu.memory_space<vmem>>, vector<1x8x128xf32>,
    %145 = arith.truncf %124 : vector<8x32xf32> to vector<8x32xbf16>
    %c1 = arith.constant 1 : index
    %c0_66 = arith.constant 0 : index
    %c0_67 = arith.constant 0 : index
    %146 = vector.load %arg2[%c1, %c0_66, %c0_67] : memref<3x32x32xbf16, #tpu.memory_space<vmem>>, vector<1x32x32xbf16>
    %147 = vector.shape_cast %146 : vector<1x32x32xbf16> to vector<32x32xbf16>
    %cst_68 = arith.constant dense<0.000000e+00> : vector<8x32xf32>
    %148 = tpu.matmul %145, %147, %cst_68 {dimension_numbers = #tpu.dot_dimension_numbers<[1], [0], [0], [1], [0, 0, 1, 1], [], []>} : vector<8x32xbf16>, vector<32x32xbf16>, vector<8x32xf32> -> vector<8x32xf32>
    %c1_69 = arith.constant 1 : index
    %c0_70 = arith.constant 0 : index
    %c0_71 = arith.constant 0 : index
    %149 = vector.load %arg3[%c1_69, %c0_70, %c0_71] : memref<3x1x32xf32, #tpu.memory_space<vmem>>, vector<1x1x32xf32>
    %150 = vector.shape_cast %149 : vector<1x1x32xf32> to vector<1x32xf32>
    %151 = vector.broadcast %150 : vector<1x32xf32> to vector<8x32xf32>
    %152 = arith.addf %148, %151 : vector<8x32xf32>
    %cst_72 = arith.constant 0.000000e+00 : f32
    %153 = vector.broadcast %cst_72 : f32 to vector<8x32xf32>
    %154 = arith.maximumf %152, %153 : vector<8x32xf32>
    %155 = arith.truncf %154 : vector<8x32xf32> to vector<8x32xbf16>
    %c1_73 = arith.constant 1 : index
    %c0_74 = arith.constant 0 : index
    %c0_75 = arith.constant 0 : index
    %156 = vector.load %arg4[%c1_73, %c0_74, %c0_75] : memref<3x32x128xbf16, #tpu.memory_space<vmem>>, vector<1x32x128xbf16>
    %157 = vector.shape_cast %156 : vector<1x32x128xbf16> to vector<32x128xbf16>
    %cst_76 = arith.constant dense<0.000000e+00> : vector<8x128xf32>
    %158 = tpu.matmul %155, %157, %cst_76 {dimension_numbers = #tpu.dot_dimension_numbers<[1], [0], [0], [1], [0, 0, 1, 1], [], []>} : vector<8x32xbf16>, vector<32x128xbf16>, vector<8x128xf32> -> vector<8x128xf32>
    %c1_77 = arith.constant 1 : index
    %c0_78 = arith.constant 0 : index
    %c0_79 = arith.constant 0 : index
    %159 = vector.load %arg5[%c1_77, %c0_78, %c0_79] : memref<3x1x128xf32, #tpu.memory_space<vmem>>, vector<1x1x128xf32>
    %160 = vector.shape_cast %159 : vector<1x1x128xf32> to vector<1x128xf32>
    %161 = vector.broadcast %160 : vector<1x128xf32> to vector<8x128xf32>
    %162 = arith.addf %158, %161 : vector<8x128xf32>
    %c12_i32 = arith.constant 12 : i32
    %163 = vector.broadcast %c12_i32 : i32 to vector<8x128xi32>
    %164 = arith.cmpi slt, %16, %163 : vector<8x128xi32>
    %cst_80 = arith.constant -1.000000e+30 : f32
    %165 = vector.broadcast %cst_80 : f32 to vector<8x128xf32>
    %166 = arith.select %164, %162, %165 : vector<8x128xi1>, vector<8x128xf32>
    %c1_81 = arith.constant 1 : index
    %c0_82 = arith.constant 0 : index
    %c0_83 = arith.constant 0 : index
    %167 = vector.load %arg13[%c1_81, %c0_82, %c0_83] : memref<3x8x128xf32, #tpu.memory_space<vmem>>, vector<1x8x128xf32>
    %168 = vector.shape_cast %167 : vector<1x8x128xf32> to vector<8x128xf32>
    %169 = vector.shape_cast %166 : vector<8x128xf32> to vector<1x8x128xf32>
    tpu.vector_store %arg13[%c1_81, %c0_82, %c0_83], %169 {strides = array<i32>} : memref<3x8x128xf32, #tpu.memory_space<vmem>>, vector<1x8x128xf32>,
    %cst_84 = arith.constant dense<0xFF800000> : vector<8xf32>
    %170 = vector.multi_reduction <maximumf>, %166, %cst_84 [1] : vector<8x128xf32> to vector<8xf32>
    %171 = vector.shape_cast %170 : vector<8xf32> to vector<8x1xf32>
    %172 = vector.broadcast %171 : vector<8x1xf32> to vector<8x128xf32>
    %173 = arith.subf %166, %172 : vector<8x128xf32>
    %174 = math.exp %173 : vector<8x128xf32>
    %cst_85 = arith.constant 0.000000e+00 : f32
    %175 = vector.broadcast %cst_85 : f32 to vector<8x128xf32>
    %176 = arith.select %164, %174, %175 : vector<8x128xi1>, vector<8x128xf32>
    %cst_86 = arith.constant dense<0.000000e+00> : vector<8xf32>
    %177 = vector.multi_reduction <add>, %176, %cst_86 [1] : vector<8x128xf32> to vector<8xf32>
    %178 = vector.shape_cast %177 : vector<8xf32> to vector<8x1xf32>
    %179 = tpu.reciprocal %178 {approx = true} : vector<8x1xf32> -> vector<8x1xf32>
    %180 = vector.broadcast %179 : vector<8x1xf32> to vector<8x128xf32>
    %181 = arith.mulf %176, %180 : vector<8x128xf32>
    %182 = math.log %178 : vector<8x1xf32>
    %183 = vector.broadcast %182 : vector<8x1xf32> to vector<8x128xf32>
    %184 = arith.subf %173, %183 : vector<8x128xf32>
    %185 = arith.mulf %181, %184 : vector<8x128xf32>
    %cst_87 = arith.constant 0.000000e+00 : f32
    %186 = vector.broadcast %cst_87 : f32 to vector<8x128xf32>
    %187 = arith.select %164, %185, %186 : vector<8x128xi1>, vector<8x128xf32>
    %cst_88 = arith.constant dense<0.000000e+00> : vector<8xf32>
    %188 = vector.multi_reduction <add>, %187, %cst_88 [1] : vector<8x128xf32> to vector<8xf32>
    %189 = vector.shape_cast %188 : vector<8xf32> to vector<8x1xf32>
    %cst_89 = arith.constant 0.000000e+00 : f32
    %190 = vector.broadcast %cst_89 : f32 to vector<8x1xf32>
    %191 = arith.subf %190, %189 : vector<8x1xf32>
    %c1_90 = arith.constant 1 : index
    %c0_91 = arith.constant 0 : index
    %c0_92 = arith.constant 0 : index
    %192 = vector.load %arg1[%c1_90, %c0_91, %c0_92] : memref<3x8x128xf32, #tpu.memory_space<vmem>>, vector<1x8x128xf32>
    %193 = vector.shape_cast %192 : vector<1x8x128xf32> to vector<8x128xf32>
    %194 = arith.addf %166, %193 : vector<8x128xf32>
    %195 = tpu.bitcast %194 : vector<8x128xf32> -> vector<8x128xi32>
    %c0_i32_93 = arith.constant 0 : i32
    %196 = vector.broadcast %c0_i32_93 : i32 to vector<8x128xi32>
    %197 = arith.cmpi slt, %195, %196 : vector<8x128xi32>
    %c2147483647_i32_94 = arith.constant 2147483647 : i32
    %198 = vector.broadcast %c2147483647_i32_94 : i32 to vector<8x128xi32>
    %199 = arith.xori %195, %198 : vector<8x128xi32>
    %200 = arith.select %197, %199, %195 : vector<8x128xi1>, vector<8x128xi32>
    %c-128_i32_95 = arith.constant -128 : i32
    %201 = vector.broadcast %c-128_i32_95 : i32 to vector<8x128xi32>
    %202 = arith.andi %200, %201 : vector<8x128xi32>
    %c127_i32_96 = arith.constant 127 : i32
    %203 = vector.broadcast %c127_i32_96 : i32 to vector<8x128xi32>
    %204 = arith.subi %203, %16 : vector<8x128xi32>
    %205 = arith.ori %202, %204 : vector<8x128xi32>
    %cst_97 = arith.constant dense<-2147483648> : vector<8xi32>
    %206 = vector.multi_reduction <maxsi>, %205, %cst_97 [1] : vector<8x128xi32> to vector<8xi32>
    %207 = vector.shape_cast %206 : vector<8xi32> to vector<8x1xi32>
    %c127_i32_98 = arith.constant 127 : i32
    %208 = vector.broadcast %c127_i32_98 : i32 to vector<8x1xi32>
    %209 = arith.andi %207, %208 : vector<8x1xi32>
    %c127_i32_99 = arith.constant 127 : i32
    %210 = vector.broadcast %c127_i32_99 : i32 to vector<8x1xi32>
    %211 = arith.subi %210, %209 : vector<8x1xi32>
    %212 = vector.broadcast %211 : vector<8x1xi32> to vector<8x128xi32>
    %213 = arith.cmpi eq, %16, %212 : vector<8x128xi32>
    %214 = arith.extui %213 : vector<8x128xi1> to vector<8x128xi32>
    %215 = arith.sitofp %214 : vector<8x128xi32> to vector<8x128xf32>
    %cst_100 = arith.constant 0.000000e+00 : f32
    %216 = vector.broadcast %cst_100 : f32 to vector<8x128xf32>
    %217 = arith.select %164, %184, %216 : vector<8x128xi1>, vector<8x128xf32>
    %218 = arith.mulf %215, %217 : vector<8x128xf32>
    %cst_101 = arith.constant dense<0.000000e+00> : vector<8xf32>
    %219 = vector.multi_reduction <add>, %218, %cst_101 [1] : vector<8x128xf32> to vector<8xf32>
    %220 = vector.shape_cast %219 : vector<8xf32> to vector<8x1xf32>
    %221 = arith.truncf %215 : vector<8x128xf32> to vector<8x128xbf16>
    %c1_102 = arith.constant 1 : index
    %c0_103 = arith.constant 0 : index
    %c0_104 = arith.constant 0 : index
    %222 = vector.load %arg6[%c1_102, %c0_103, %c0_104] : memref<3x128x32xbf16, #tpu.memory_space<vmem>>, vector<1x128x32xbf16>
    %223 = vector.shape_cast %222 : vector<1x128x32xbf16> to vector<128x32xbf16>
    %cst_105 = arith.constant dense<0.000000e+00> : vector<8x32xf32>
    %224 = tpu.matmul %221, %223, %cst_105 {dimension_numbers = #tpu.dot_dimension_numbers<[1], [0], [0], [1], [0, 0, 1, 1], [], []>} : vector<8x128xbf16>, vector<128x32xbf16>, vector<8x32xf32> -> vector<8x32xf32>
    %cst_106 = arith.constant dense<0.000000e+00> : vector<8xf32>
    %225 = vector.multi_reduction <add>, %224, %cst_106 [1] : vector<8x32xf32> to vector<8xf32>
    %226 = vector.shape_cast %225 : vector<8xf32> to vector<8x1xf32>
    %cst_107 = arith.constant 3.200000e+01 : f32
    %227 = vector.broadcast %cst_107 : f32 to vector<8x1xf32>
    %228 = arith.divf %226, %227 : vector<8x1xf32>
    %229 = vector.broadcast %228 : vector<8x1xf32> to vector<8x32xf32>
    %230 = arith.subf %224, %229 : vector<8x32xf32>
    %231 = arith.mulf %230, %230 : vector<8x32xf32>
    %cst_108 = arith.constant dense<0.000000e+00> : vector<8xf32>
    %232 = vector.multi_reduction <add>, %231, %cst_108 [1] : vector<8x32xf32> to vector<8xf32>
    %233 = vector.shape_cast %232 : vector<8xf32> to vector<8x1xf32>
    %cst_109 = arith.constant 3.200000e+01 : f32
    %234 = vector.broadcast %cst_109 : f32 to vector<8x1xf32>
    %235 = arith.divf %233, %234 : vector<8x1xf32>
    %236 = vector.broadcast %228 : vector<8x1xf32> to vector<8x32xf32>
    %237 = arith.subf %224, %236 : vector<8x32xf32>
    %cst_110 = arith.constant 9.99999974E-6 : f32
    %238 = vector.broadcast %cst_110 : f32 to vector<8x1xf32>
    %239 = arith.addf %235, %238 : vector<8x1xf32>
    %240 = math.rsqrt %239 : vector<8x1xf32>
    %241 = vector.broadcast %240 : vector<8x1xf32> to vector<8x32xf32>
    %242 = arith.mulf %237, %241 : vector<8x32xf32>
    %c1_111 = arith.constant 1 : index
    %c0_112 = arith.constant 0 : index
    %c0_113 = arith.constant 0 : index
    %243 = vector.load %arg7[%c1_111, %c0_112, %c0_113] : memref<3x1x32xf32, #tpu.memory_space<vmem>>, vector<1x1x32xf32>
    %244 = vector.shape_cast %243 : vector<1x1x32xf32> to vector<1x32xf32>
    %245 = vector.broadcast %244 : vector<1x32xf32> to vector<8x32xf32>
    %246 = arith.mulf %245, %242 : vector<8x32xf32>
    %247 = arith.addf %124, %246 : vector<8x32xf32>
    %c1_114 = arith.constant 1 : index
    %c0_115 = arith.constant 0 : index
    %c0_116 = arith.constant 0 : index
    %248 = vector.load %arg8[%c1_114, %c0_115, %c0_116] : memref<3x1x32xf32, #tpu.memory_space<vmem>>, vector<1x1x32xf32>
    %249 = vector.shape_cast %248 : vector<1x1x32xf32> to vector<1x32xf32>
    %250 = vector.broadcast %249 : vector<1x32xf32> to vector<8x32xf32>
    %251 = arith.addf %247, %250 : vector<8x32xf32>
    %c0_i32_117 = arith.constant 0 : i32
    %252 = vector.broadcast %c0_i32_117 : i32 to vector<8x128xi32>
    %253 = arith.cmpi eq, %17, %252 : vector<8x128xi32>
    %254 = arith.sitofp %211 : vector<8x1xi32> to vector<8x1xf32>
    %c1_i32_118 = arith.constant 1 : i32
    %255 = vector.broadcast %c1_i32_118 : i32 to vector<8x128xi32>
    %256 = arith.cmpi eq, %17, %255 : vector<8x128xi32>
    %c2_i32_119 = arith.constant 2 : i32
    %257 = vector.broadcast %c2_i32_119 : i32 to vector<8x128xi32>
    %258 = arith.cmpi eq, %17, %257 : vector<8x128xi32>
    %cst_120 = arith.constant 0.000000e+00 : f32
    %259 = vector.shape_cast %191 : vector<8x1xf32> to vector<8x1xf32>
    %260 = vector.broadcast %259 : vector<8x1xf32> to vector<8x128xf32>
    %261 = vector.broadcast %cst_120 : f32 to vector<8x128xf32>
    %262 = arith.select %258, %260, %261 : vector<8x128xi1>, vector<8x128xf32>
    %263 = vector.shape_cast %220 : vector<8x1xf32> to vector<8x1xf32>
    %264 = vector.broadcast %263 : vector<8x1xf32> to vector<8x128xf32>
    %265 = arith.select %256, %264, %262 : vector<8x128xi1>, vector<8x128xf32>
    %266 = vector.shape_cast %254 : vector<8x1xf32> to vector<8x1xf32>
    %267 = vector.broadcast %266 : vector<8x1xf32> to vector<8x128xf32>
    %268 = arith.select %253, %267, %265 : vector<8x128xi1>, vector<8x128xf32>
    %c1_121 = arith.constant 1 : index
    %c0_122 = arith.constant 0 : index
    %c0_123 = arith.constant 0 : index
    %269 = vector.load %arg14[%c1_121, %c0_122, %c0_123] : memref<3x8x128xf32, #tpu.memory_space<vmem>>, vector<1x8x128xf32>
    %270 = vector.shape_cast %269 : vector<1x8x128xf32> to vector<8x128xf32>
    %271 = vector.shape_cast %268 : vector<8x128xf32> to vector<1x8x128xf32>
    tpu.vector_store %arg14[%c1_121, %c0_122, %c0_123], %271 {strides = array<i32>} : memref<3x8x128xf32, #tpu.memory_space<vmem>>, vector<1x8x128xf32>,
    %272 = arith.truncf %251 : vector<8x32xf32> to vector<8x32xbf16>
    %c2 = arith.constant 2 : index
    %c0_124 = arith.constant 0 : index
    %c0_125 = arith.constant 0 : index
    %273 = vector.load %arg2[%c2, %c0_124, %c0_125] : memref<3x32x32xbf16, #tpu.memory_space<vmem>>, vector<1x32x32xbf16>
    %274 = vector.shape_cast %273 : vector<1x32x32xbf16> to vector<32x32xbf16>
    %cst_126 = arith.constant dense<0.000000e+00> : vector<8x32xf32>
    %275 = tpu.matmul %272, %274, %cst_126 {dimension_numbers = #tpu.dot_dimension_numbers<[1], [0], [0], [1], [0, 0, 1, 1], [], []>} : vector<8x32xbf16>, vector<32x32xbf16>, vector<8x32xf32> -> vector<8x32xf32>
    %c2_127 = arith.constant 2 : index
    %c0_128 = arith.constant 0 : index
    %c0_129 = arith.constant 0 : index
    %276 = vector.load %arg3[%c2_127, %c0_128, %c0_129] : memref<3x1x32xf32, #tpu.memory_space<vmem>>, vector<1x1x32xf32>
    %277 = vector.shape_cast %276 : vector<1x1x32xf32> to vector<1x32xf32>
    %278 = vector.broadcast %277 : vector<1x32xf32> to vector<8x32xf32>
    %279 = arith.addf %275, %278 : vector<8x32xf32>
    %cst_130 = arith.constant 0.000000e+00 : f32
    %280 = vector.broadcast %cst_130 : f32 to vector<8x32xf32>
    %281 = arith.maximumf %279, %280 : vector<8x32xf32>
    %282 = arith.truncf %281 : vector<8x32xf32> to vector<8x32xbf16>
    %c2_131 = arith.constant 2 : index
    %c0_132 = arith.constant 0 : index
    %c0_133 = arith.constant 0 : index
    %283 = vector.load %arg4[%c2_131, %c0_132, %c0_133] : memref<3x32x128xbf16, #tpu.memory_space<vmem>>, vector<1x32x128xbf16>
    %284 = vector.shape_cast %283 : vector<1x32x128xbf16> to vector<32x128xbf16>
    %cst_134 = arith.constant dense<0.000000e+00> : vector<8x128xf32>
    %285 = tpu.matmul %282, %284, %cst_134 {dimension_numbers = #tpu.dot_dimension_numbers<[1], [0], [0], [1], [0, 0, 1, 1], [], []>} : vector<8x32xbf16>, vector<32x128xbf16>, vector<8x128xf32> -> vector<8x128xf32>
    %c2_135 = arith.constant 2 : index
    %c0_136 = arith.constant 0 : index
    %c0_137 = arith.constant 0 : index
    %286 = vector.load %arg5[%c2_135, %c0_136, %c0_137] : memref<3x1x128xf32, #tpu.memory_space<vmem>>, vector<1x1x128xf32>
    %287 = vector.shape_cast %286 : vector<1x1x128xf32> to vector<1x128xf32>
    %288 = vector.broadcast %287 : vector<1x128xf32> to vector<8x128xf32>
    %289 = arith.addf %285, %288 : vector<8x128xf32>
    %c7_i32 = arith.constant 7 : i32
    %290 = vector.broadcast %c7_i32 : i32 to vector<8x128xi32>
    %291 = arith.cmpi slt, %16, %290 : vector<8x128xi32>
    %cst_138 = arith.constant -1.000000e+30 : f32
    %292 = vector.broadcast %cst_138 : f32 to vector<8x128xf32>
    %293 = arith.select %291, %289, %292 : vector<8x128xi1>, vector<8x128xf32>
    %c2_139 = arith.constant 2 : index
    %c0_140 = arith.constant 0 : index
    %c0_141 = arith.constant 0 : index
    %294 = vector.load %arg13[%c2_139, %c0_140, %c0_141] : memref<3x8x128xf32, #tpu.memory_space<vmem>>, vector<1x8x128xf32>
    %295 = vector.shape_cast %294 : vector<1x8x128xf32> to vector<8x128xf32>
    %296 = vector.shape_cast %293 : vector<8x128xf32> to vector<1x8x128xf32>
    tpu.vector_store %arg13[%c2_139, %c0_140, %c0_141], %296 {strides = array<i32>} : memref<3x8x128xf32, #tpu.memory_space<vmem>>, vector<1x8x128xf32>,
    %cst_142 = arith.constant dense<0xFF800000> : vector<8xf32>
    %297 = vector.multi_reduction <maximumf>, %293, %cst_142 [1] : vector<8x128xf32> to vector<8xf32>
    %298 = vector.shape_cast %297 : vector<8xf32> to vector<8x1xf32>
    %299 = vector.broadcast %298 : vector<8x1xf32> to vector<8x128xf32>
    %300 = arith.subf %293, %299 : vector<8x128xf32>
    %301 = math.exp %300 : vector<8x128xf32>
    %cst_143 = arith.constant 0.000000e+00 : f32
    %302 = vector.broadcast %cst_143 : f32 to vector<8x128xf32>
    %303 = arith.select %291, %301, %302 : vector<8x128xi1>, vector<8x128xf32>
    %cst_144 = arith.constant dense<0.000000e+00> : vector<8xf32>
    %304 = vector.multi_reduction <add>, %303, %cst_144 [1] : vector<8x128xf32> to vector<8xf32>
    %305 = vector.shape_cast %304 : vector<8xf32> to vector<8x1xf32>
    %306 = tpu.reciprocal %305 {approx = true} : vector<8x1xf32> -> vector<8x1xf32>
    %307 = vector.broadcast %306 : vector<8x1xf32> to vector<8x128xf32>
    %308 = arith.mulf %303, %307 : vector<8x128xf32>
    %309 = math.log %305 : vector<8x1xf32>
    %310 = vector.broadcast %309 : vector<8x1xf32> to vector<8x128xf32>
    %311 = arith.subf %300, %310 : vector<8x128xf32>
    %312 = arith.mulf %308, %311 : vector<8x128xf32>
    %cst_145 = arith.constant 0.000000e+00 : f32
    %313 = vector.broadcast %cst_145 : f32 to vector<8x128xf32>
    %314 = arith.select %291, %312, %313 : vector<8x128xi1>, vector<8x128xf32>
    %cst_146 = arith.constant dense<0.000000e+00> : vector<8xf32>
    %315 = vector.multi_reduction <add>, %314, %cst_146 [1] : vector<8x128xf32> to vector<8xf32>
    %316 = vector.shape_cast %315 : vector<8xf32> to vector<8x1xf32>
    %cst_147 = arith.constant 0.000000e+00 : f32
    %317 = vector.broadcast %cst_147 : f32 to vector<8x1xf32>
    %318 = arith.subf %317, %316 : vector<8x1xf32>
    %c2_148 = arith.constant 2 : index
    %c0_149 = arith.constant 0 : index
    %c0_150 = arith.constant 0 : index
    %319 = vector.load %arg1[%c2_148, %c0_149, %c0_150] : memref<3x8x128xf32, #tpu.memory_space<vmem>>, vector<1x8x128xf32>
    %320 = vector.shape_cast %319 : vector<1x8x128xf32> to vector<8x128xf32>
    %321 = arith.addf %293, %320 : vector<8x128xf32>
    %322 = tpu.bitcast %321 : vector<8x128xf32> -> vector<8x128xi32>
    %c0_i32_151 = arith.constant 0 : i32
    %323 = vector.broadcast %c0_i32_151 : i32 to vector<8x128xi32>
    %324 = arith.cmpi slt, %322, %323 : vector<8x128xi32>
    %c2147483647_i32_152 = arith.constant 2147483647 : i32
    %325 = vector.broadcast %c2147483647_i32_152 : i32 to vector<8x128xi32>
    %326 = arith.xori %322, %325 : vector<8x128xi32>
    %327 = arith.select %324, %326, %322 : vector<8x128xi1>, vector<8x128xi32>
    %c-128_i32_153 = arith.constant -128 : i32
    %328 = vector.broadcast %c-128_i32_153 : i32 to vector<8x128xi32>
    %329 = arith.andi %327, %328 : vector<8x128xi32>
    %c127_i32_154 = arith.constant 127 : i32
    %330 = vector.broadcast %c127_i32_154 : i32 to vector<8x128xi32>
    %331 = arith.subi %330, %16 : vector<8x128xi32>
    %332 = arith.ori %329, %331 : vector<8x128xi32>
    %cst_155 = arith.constant dense<-2147483648> : vector<8xi32>
    %333 = vector.multi_reduction <maxsi>, %332, %cst_155 [1] : vector<8x128xi32> to vector<8xi32>
    %334 = vector.shape_cast %333 : vector<8xi32> to vector<8x1xi32>
    %c127_i32_156 = arith.constant 127 : i32
    %335 = vector.broadcast %c127_i32_156 : i32 to vector<8x1xi32>
    %336 = arith.andi %334, %335 : vector<8x1xi32>
    %c127_i32_157 = arith.constant 127 : i32
    %337 = vector.broadcast %c127_i32_157 : i32 to vector<8x1xi32>
    %338 = arith.subi %337, %336 : vector<8x1xi32>
    %339 = vector.broadcast %338 : vector<8x1xi32> to vector<8x128xi32>
    %340 = arith.cmpi eq, %16, %339 : vector<8x128xi32>
    %341 = arith.extui %340 : vector<8x128xi1> to vector<8x128xi32>
    %342 = arith.sitofp %341 : vector<8x128xi32> to vector<8x128xf32>
    %cst_158 = arith.constant 0.000000e+00 : f32
    %343 = vector.broadcast %cst_158 : f32 to vector<8x128xf32>
    %344 = arith.select %291, %311, %343 : vector<8x128xi1>, vector<8x128xf32>
    %345 = arith.mulf %342, %344 : vector<8x128xf32>
    %cst_159 = arith.constant dense<0.000000e+00> : vector<8xf32>
    %346 = vector.multi_reduction <add>, %345, %cst_159 [1] : vector<8x128xf32> to vector<8xf32>
    %347 = vector.shape_cast %346 : vector<8xf32> to vector<8x1xf32>
    %348 = arith.truncf %342 : vector<8x128xf32> to vector<8x128xbf16>
    %c2_160 = arith.constant 2 : index
    %c0_161 = arith.constant 0 : index
    %c0_162 = arith.constant 0 : index
    %349 = vector.load %arg6[%c2_160, %c0_161, %c0_162] : memref<3x128x32xbf16, #tpu.memory_space<vmem>>, vector<1x128x32xbf16>
    %350 = vector.shape_cast %349 : vector<1x128x32xbf16> to vector<128x32xbf16>
    %cst_163 = arith.constant dense<0.000000e+00> : vector<8x32xf32>
    %351 = tpu.matmul %348, %350, %cst_163 {dimension_numbers = #tpu.dot_dimension_numbers<[1], [0], [0], [1], [0, 0, 1, 1], [], []>} : vector<8x128xbf16>, vector<128x32xbf16>, vector<8x32xf32> -> vector<8x32xf32>
    %cst_164 = arith.constant dense<0.000000e+00> : vector<8xf32>
    %352 = vector.multi_reduction <add>, %351, %cst_164 [1] : vector<8x32xf32> to vector<8xf32>
    %353 = vector.shape_cast %352 : vector<8xf32> to vector<8x1xf32>
    %cst_165 = arith.constant 3.200000e+01 : f32
    %354 = vector.broadcast %cst_165 : f32 to vector<8x1xf32>
    %355 = arith.divf %353, %354 : vector<8x1xf32>
    %356 = vector.broadcast %355 : vector<8x1xf32> to vector<8x32xf32>
    %357 = arith.subf %351, %356 : vector<8x32xf32>
    %358 = arith.mulf %357, %357 : vector<8x32xf32>
    %cst_166 = arith.constant dense<0.000000e+00> : vector<8xf32>
    %359 = vector.multi_reduction <add>, %358, %cst_166 [1] : vector<8x32xf32> to vector<8xf32>
    %360 = vector.shape_cast %359 : vector<8xf32> to vector<8x1xf32>
    %cst_167 = arith.constant 3.200000e+01 : f32
    %361 = vector.broadcast %cst_167 : f32 to vector<8x1xf32>
    %362 = arith.divf %360, %361 : vector<8x1xf32>
    %363 = vector.broadcast %355 : vector<8x1xf32> to vector<8x32xf32>
    %364 = arith.subf %351, %363 : vector<8x32xf32>
    %cst_168 = arith.constant 9.99999974E-6 : f32
    %365 = vector.broadcast %cst_168 : f32 to vector<8x1xf32>
    %366 = arith.addf %362, %365 : vector<8x1xf32>
    %367 = math.rsqrt %366 : vector<8x1xf32>
    %368 = vector.broadcast %367 : vector<8x1xf32> to vector<8x32xf32>
    %369 = arith.mulf %364, %368 : vector<8x32xf32>
    %c2_169 = arith.constant 2 : index
    %c0_170 = arith.constant 0 : index
    %c0_171 = arith.constant 0 : index
    %370 = vector.load %arg7[%c2_169, %c0_170, %c0_171] : memref<3x1x32xf32, #tpu.memory_space<vmem>>, vector<1x1x32xf32>
    %371 = vector.shape_cast %370 : vector<1x1x32xf32> to vector<1x32xf32>
    %372 = vector.broadcast %371 : vector<1x32xf32> to vector<8x32xf32>
    %373 = arith.mulf %372, %369 : vector<8x32xf32>
    %374 = arith.addf %251, %373 : vector<8x32xf32>
    %c2_172 = arith.constant 2 : index
    %c0_173 = arith.constant 0 : index
    %c0_174 = arith.constant 0 : index
    %375 = vector.load %arg8[%c2_172, %c0_173, %c0_174] : memref<3x1x32xf32, #tpu.memory_space<vmem>>, vector<1x1x32xf32>
    %376 = vector.shape_cast %375 : vector<1x1x32xf32> to vector<1x32xf32>
    %377 = vector.broadcast %376 : vector<1x32xf32> to vector<8x32xf32>
    %378 = arith.addf %374, %377 : vector<8x32xf32>
    %c0_i32_175 = arith.constant 0 : i32
    %379 = vector.broadcast %c0_i32_175 : i32 to vector<8x128xi32>
    %380 = arith.cmpi eq, %17, %379 : vector<8x128xi32>
    %381 = arith.sitofp %338 : vector<8x1xi32> to vector<8x1xf32>
    %c1_i32_176 = arith.constant 1 : i32
    %382 = vector.broadcast %c1_i32_176 : i32 to vector<8x128xi32>
    %383 = arith.cmpi eq, %17, %382 : vector<8x128xi32>
    %c2_i32_177 = arith.constant 2 : i32
    %384 = vector.broadcast %c2_i32_177 : i32 to vector<8x128xi32>
    %385 = arith.cmpi eq, %17, %384 : vector<8x128xi32>
    %cst_178 = arith.constant 0.000000e+00 : f32
    %386 = vector.shape_cast %318 : vector<8x1xf32> to vector<8x1xf32>
    %387 = vector.broadcast %386 : vector<8x1xf32> to vector<8x128xf32>
    %388 = vector.broadcast %cst_178 : f32 to vector<8x128xf32>
    %389 = arith.select %385, %387, %388 : vector<8x128xi1>, vector<8x128xf32>
    %390 = vector.shape_cast %347 : vector<8x1xf32> to vector<8x1xf32>
    %391 = vector.broadcast %390 : vector<8x1xf32> to vector<8x128xf32>
    %392 = arith.select %383, %391, %389 : vector<8x128xi1>, vector<8x128xf32>
    %393 = vector.shape_cast %381 : vector<8x1xf32> to vector<8x1xf32>
    %394 = vector.broadcast %393 : vector<8x1xf32> to vector<8x128xf32>
    %395 = arith.select %380, %394, %392 : vector<8x128xi1>, vector<8x128xf32>
    %c2_179 = arith.constant 2 : index
    %c0_180 = arith.constant 0 : index
    %c0_181 = arith.constant 0 : index
    %396 = vector.load %arg14[%c2_179, %c0_180, %c0_181] : memref<3x8x128xf32, #tpu.memory_space<vmem>>, vector<1x8x128xf32>
    %397 = vector.shape_cast %396 : vector<1x8x128xf32> to vector<8x128xf32>
    %398 = vector.shape_cast %395 : vector<8x128xf32> to vector<1x8x128xf32>
    tpu.vector_store %arg14[%c2_179, %c0_180, %c0_181], %398 {strides = array<i32>} : memref<3x8x128xf32, #tpu.memory_space<vmem>>, vector<1x8x128xf32>,
    %c0_182 = arith.constant 0 : index
    %c0_183 = arith.constant 0 : index
    %399 = vector.load %arg15[%c0_182, %c0_183] : memref<8x32xf32, #tpu.memory_space<vmem>>, vector<8x32xf32>
    tpu.vector_store %arg15[%c0_182, %c0_183], %378 {strides = array<i32>} : memref<8x32xf32, #tpu.memory_space<vmem>>, vector<8x32xf32>,
    return
  }
}

</mosaic_0001>

<llo_original>
// kernel: _fused_forward.1
$region0: #{_fused_forward.1}
  #allocation0 [shape = 'u32[]', space=smem, size = 0x4, offset = 0x4, fixed_abs, tag = 'smem constant byte address 0x4 - core index']
  #allocation1 [shape = 'u32[144,128]{1,0:T(1,128)}', space=vmem, size = 0x12000, scoped, tag = 'internal scratch']
  %s0 = inlined_call_operand.vmem [shape: f32[8,32], index: 0, kind: input, shape index: {}]
  %s1 = inlined_call_operand.vmem [shape: f32[3,8,128], index: 1, kind: input, shape index: {}]
  %s2 = inlined_call_operand.vmem [shape: bf16[3,32,32], index: 2, kind: input, shape index: {}]
  %s3 = inlined_call_operand.vmem [shape: f32[3,1,32], index: 3, kind: input, shape index: {}]
  %s4 = inlined_call_operand.vmem [shape: bf16[3,32,128], index: 4, kind: input, shape index: {}]
  %s5 = inlined_call_operand.vmem [shape: f32[3,1,128], index: 5, kind: input, shape index: {}]
  %s6 = inlined_call_operand.vmem [shape: bf16[3,128,32], index: 6, kind: input, shape index: {}]
  %s7 = inlined_call_operand.vmem [shape: f32[3,1,32], index: 7, kind: input, shape index: {}]
  %s8 = inlined_call_operand.vmem [shape: f32[3,1,32], index: 8, kind: input, shape index: {}]
  %s9 = inlined_call_operand.vmem [shape: bf16[32,32], index: 9, kind: input, shape index: {}]
  %s10 = inlined_call_operand.vmem [shape: f32[1,32], index: 10, kind: input, shape index: {}]
  %s11 = inlined_call_operand.vmem [shape: bf16[32,128], index: 11, kind: input, shape index: {}]
  %s12 = inlined_call_operand.vmem [shape: f32[1,128], index: 12, kind: input, shape index: {}]
  %s13 = inlined_call_operand.vmem [shape: f32[3,8,128], index: 13, kind: output, shape index: {0}]
  %s14 = inlined_call_operand.vmem [shape: f32[3,8,128], index: 14, kind: output, shape index: {1}]
  %s15 = inlined_call_operand.hbm [shape: f32[8,32], index: 15, kind: output, shape index: {2}]
  %s16 = inlined_call_operand.vmem [shape: f32[8,128], index: 16, kind: output, shape index: {3}]
  %17 = xla_tuple %s13, %s14, %s15, %s16
  %s18 = sld [smem:[#allocation0]]
  $region86: #{_fused_forward.1} parent=0
    _
  %s20 = ssub.s32 1, %s18
  %s21 = scalar_select 0, %s20, %s18
  $region1: #{_fused_forward.1} parent=0
    #allocation2 [shape = 'u8[4096]{0}', space=vmem, size = 0x1000, scoped, tag = 'output window, operand 2, single buffered']
    #allocation3 [shape = 's32[1]{0}', space=sflag, size = 0x4, scoped, tag = 'scoped memory for _fused_forward.1']
    %22 = vsyncpa [#allocation3], 0
    // Predicated region
    $region2: #{_fused_forward.1} parent=1 // pred_check
      _
    $region3: #{_fused_forward.1} parent=1 // pred_check_branch
      %24 = sbr.rel (0) target = $region5
    $region4: #{_fused_forward.1} parent=1 // pred_region
      _
    $region5: #{_fused_forward.1} parent=1 // pred_fallthru
      _
    // Predicated region
    $region6: #{_fused_forward.1} parent=1 // pred_check
      _
    $region7: #{_fused_forward.1} parent=1 // pred_check_branch
      %26 = sbr.rel (0) target = $region9
    $region8: #{_fused_forward.1} parent=1 // pred_region
      _
    $region9: #{_fused_forward.1} parent=1 // pred_fallthru
      _
    // Predicated region
    $region10: #{_fused_forward.1} parent=1 // pred_check
      _
    $region11: #{_fused_forward.1} parent=1 // pred_check_branch
      %28 = sbr.rel (0) target = $region13
    $region12: #{_fused_forward.1} parent=1 // pred_region
      _
    $region13: #{_fused_forward.1} parent=1 // pred_fallthru
      _
    // Predicated region
    $region14: #{_fused_forward.1} parent=1 // pred_check
      _
    $region15: #{_fused_forward.1} parent=1 // pred_check_branch
      %30 = sbr.rel (0) target = $region17
    $region16: #{_fused_forward.1} parent=1 // pred_region
      _
    $region17: #{_fused_forward.1} parent=1 // pred_fallthru
      _
    // Predicated region
    $region18: #{_fused_forward.1} parent=1 // pred_check
      _
    $region19: #{_fused_forward.1} parent=1 // pred_check_branch
      %32 = sbr.rel (0) target = $region21
    $region20: #{_fused_forward.1} parent=1 // pred_region
      _
    $region21: #{_fused_forward.1} parent=1 // pred_fallthru
      _
    // Predicated region
    $region22: #{_fused_forward.1} parent=1 // pred_check
      _
    $region23: #{_fused_forward.1} parent=1 // pred_check_branch
      %34 = sbr.rel (0) target = $region25
    $region24: #{_fused_forward.1} parent=1 // pred_region
      _
    $region25: #{_fused_forward.1} parent=1 // pred_fallthru
      _
    // Predicated region
    $region26: #{_fused_forward.1} parent=1 // pred_check
      _
    $region27: #{_fused_forward.1} parent=1 // pred_check_branch
      %36 = sbr.rel (0) target = $region29
    $region28: #{_fused_forward.1} parent=1 // pred_region
      _
    $region29: #{_fused_forward.1} parent=1 // pred_fallthru
      _
    // Predicated region
    $region30: #{_fused_forward.1} parent=1 // pred_check
      _
    $region31: #{_fused_forward.1} parent=1 // pred_check_branch
      %38 = sbr.rel (0) target = $region33
    $region32: #{_fused_forward.1} parent=1 // pred_region
      _
    $region33: #{_fused_forward.1} parent=1 // pred_fallthru
      _
    // Predicated region
    $region34: #{_fused_forward.1} parent=1 // pred_check
      _
    $region35: #{_fused_forward.1} parent=1 // pred_check_branch
      %40 = sbr.rel (0) target = $region37
    $region36: #{_fused_forward.1} parent=1 // pred_region
      _
    $region37: #{_fused_forward.1} parent=1 // pred_fallthru
      _
    // Predicated region
    $region38: #{_fused_forward.1} parent=1 // pred_check
      _
    $region39: #{_fused_forward.1} parent=1 // pred_check_branch
      %42 = sbr.rel (0) target = $region41
    $region40: #{_fused_forward.1} parent=1 // pred_region
      _
    $region41: #{_fused_forward.1} parent=1 // pred_fallthru
      _
    // Predicated region
    $region42: #{_fused_forward.1} parent=1 // pred_check
      _
    $region43: #{_fused_forward.1} parent=1 // pred_check_branch
      %44 = sbr.rel (0) target = $region45
    $region44: #{_fused_forward.1} parent=1 // pred_region
      _
    $region45: #{_fused_forward.1} parent=1 // pred_fallthru
      _
    // Predicated region
    $region46: #{_fused_forward.1} parent=1 // pred_check
      _
    $region47: #{_fused_forward.1} parent=1 // pred_check_branch
      %46 = sbr.rel (0) target = $region49
    $region48: #{_fused_forward.1} parent=1 // pred_region
      _
    $region49: #{_fused_forward.1} parent=1 // pred_fallthru
      _
    // Predicated region
    $region50: #{_fused_forward.1} parent=1 // pred_check
      _
    $region51: #{_fused_forward.1} parent=1 // pred_check_branch
      %48 = sbr.rel (0) target = $region53
    $region52: #{_fused_forward.1} parent=1 // pred_region
      _
    $region53: #{_fused_forward.1} parent=1 // pred_fallthru
      _
    %v50 = vld [vmem:[%s0] sm:$0xff]
    %v51 = vpack.c.bf16 %v50, %v50
    %v52 = vld [vmem:[%s9] sm:$0xf]
    %v53 = vld [vmem:[%s9 + $0x4] sm:$0xf]
    %v54 = vld [vmem:[%s9 + $0x8] sm:$0xf]
    %v55 = vld [vmem:[%s9 + $0xc] sm:$0xf]
    %v56 = vld [vmem:[%s10] sm:$0x1]
    %v58 = vlaneseq
    %v59 = vshrl.u32 %v58, 7
    %v60 = vsub.s32 0, %v59
    %v61 = vrot.slane %v56, %v60
    %v67 = vunpack.c.l.b16 %v52
    %v68 = vunpack.c.l.b16 %v53
    %v69 = vunpack.c.l.b16 %v54
    %v70 = vunpack.c.l.b16 %v55
    %v71 = vpack.c.b16 %v68, %v67
    %v72 = vpack.c.b16 %v70, %v69
    %vm75 = vcmask 261120
    %v77 = vsel %vm75, %v51, 0
    %79 = vmatprep.subr.bf16.mxu0 0
    %80 = vmatpush1.bf16.msra.mxu0 0
    %81 = vmatprep.subr.bf16.mxu0 0
    %82 = vmatpush1.bf16.msra.mxu0 0
    %83 = vmatprep.subr.bf16.mxu0 0
    %84 = vmatpush1.bf16.msra.mxu0 0
    %85 = vmatprep.subr.bf16.mxu0 0
    %86 = vmatpush1.bf16.msra.mxu0 0
    %87 = vmatprep.subr.bf16.mxu0 0
    %88 = vmatpush1.bf16.msra.mxu0 0
    %89 = vmatprep.subr.bf16.mxu0 0
    %90 = vmatpush1.bf16.msra.mxu0 0
    %91 = vmatprep.subr.bf16.mxu0 0
    %92 = vmatpush1.bf16.msra.mxu0 %v72
    %93 = vmatprep.subr.bf16.mxu0 0
    %94 = vmatpush1.bf16.msra.mxu0 %v71
    %95 = vmatprep.subr.bf16.mxu0 0
    %96 = vmatpush2.bf16.msra.mxu0 0
    %97 = vmatprep.subr.bf16.mxu0 0
    %98 = vmatpush2.bf16.msra.mxu0 0
    %99 = vmatprep.subr.bf16.mxu0 0
    %100 = vmatpush2.bf16.msra.mxu0 0
    %101 = vmatprep.subr.bf16.mxu0 0
    %102 = vmatpush2.bf16.msra.mxu0 0
    %103 = vmatprep.subr.bf16.mxu0 0
    %104 = vmatpush2.bf16.msra.mxu0 0
    %105 = vmatprep.subr.bf16.mxu0 0
    %106 = vmatpush2.bf16.msra.mxu0 0
    %107 = vmatprep.subr.bf16.mxu0 0
    %108 = vmatpush2.bf16.msra.mxu0 0
    %109 = vmatprep.subr.bf16.mxu0 0
    %110 = vmatpush2.bf16.msra.mxu0 0
    %111 = vmatprep.mubr.bf16.mxu0 0
    %112 = vmatmul.mubr.bf16.gmra.mxu0 %v77
    %v113 = vpop.f32.mrf.mxu0
    %v114 = vadd.f32 %v61, %v113
    %v115 = vpop.f32.mrf.mxu0
    %v116 = vpop.f32.mrf.mxu0
    %v117 = vpop.f32.mrf.mxu0
    %118 = vdwg.mxu0
    %v119 = vmax.f32 %v114, 0.0
    %v120 = vpack.c.bf16 %v119, %v119
    %v121 = vld [vmem:[%s11] sm:$0xf]
    %v122 = vld [vmem:[%s11 + $0x4] sm:$0xf]
    %v123 = vld [vmem:[%s11 + $0x8] sm:$0xf]
    %v124 = vld [vmem:[%s11 + $0xc] sm:$0xf]
    %v125 = vld [vmem:[%s12] sm:$0x1]
    %v127 = vlaneseq
    %v128 = vshrl.u32 %v127, 7
    %v129 = vsub.s32 0, %v128
    %v130 = vrot.slane %v125, %v129
    %v136 = vunpack.c.l.b16 %v121
    %v137 = vunpack.c.l.b16 %v122
    %v138 = vunpack.c.l.b16 %v123
    %v139 = vunpack.c.l.b16 %v124
    %v140 = vpack.c.b16 %v137, %v136
    %v141 = vpack.c.b16 %v139, %v138
    %v145 = vsel %vm75, %v120, 0
    %147 = vmatprep.subr.bf16.mxu0 0
    %148 = vmatpush1.bf16.msra.mxu0 0
    %149 = vmatprep.subr.bf16.mxu0 0
    %150 = vmatpush1.bf16.msra.mxu0 0
    %151 = vmatprep.subr.bf16.mxu0 0
    %152 = vmatpush1.bf16.msra.mxu0 0
    %153 = vmatprep.subr.bf16.mxu0 0
    %154 = vmatpush1.bf16.msra.mxu0 0
    %155 = vmatprep.subr.bf16.mxu0 0
    %156 = vmatpush1.bf16.msra.mxu0 0
    %157 = vmatprep.subr.bf16.mxu0 0
    %158 = vmatpush1.bf16.msra.mxu0 0
    %159 = vmatprep.subr.bf16.mxu0 0
    %160 = vmatpush1.bf16.msra.mxu0 %v141
    %161 = vmatprep.subr.bf16.mxu0 0
    %162 = vmatpush1.bf16.msra.mxu0 %v140
    %163 = vmatprep.subr.bf16.mxu0 0
    %164 = vmatpush2.bf16.msra.mxu0 0
    %165 = vmatprep.subr.bf16.mxu0 0
    %166 = vmatpush2.bf16.msra.mxu0 0
    %167 = vmatprep.subr.bf16.mxu0 0
    %168 = vmatpush2.bf16.msra.mxu0 0
    %169 = vmatprep.subr.bf16.mxu0 0
    %170 = vmatpush2.bf16.msra.mxu0 0
    %171 = vmatprep.subr.bf16.mxu0 0
    %172 = vmatpush2.bf16.msra.mxu0 0
    %173 = vmatprep.subr.bf16.mxu0 0
    %174 = vmatpush2.bf16.msra.mxu0 0
    %175 = vmatprep.subr.bf16.mxu0 0
    %176 = vmatpush2.bf16.msra.mxu0 0
    %177 = vmatprep.subr.bf16.mxu0 0
    %178 = vmatpush2.bf16.msra.mxu0 0
    %179 = vmatprep.mubr.bf16.mxu0 0
    %180 = vmatmul.mubr.bf16.gmra.mxu0 %v145
    %v181 = vpop.f32.mrf.mxu0
    %v182 = vadd.f32 %v130, %v181
    %v183 = vpop.f32.mrf.mxu0
    %v184 = vpop.f32.mrf.mxu0
    %v185 = vpop.f32.mrf.mxu0
    %186 = vdwg.mxu0
    %187 = vst [vmem:[%s16] sm:$0xff] %v182
    %v188 = vlaneseq
    %v189 = vand.u32 %v188, 127
    %v190 = vld [vmem:[%s2] sm:$0xf]
    %v191 = vld [vmem:[%s2 + $0x4] sm:$0xf]
    %v192 = vld [vmem:[%s2 + $0x8] sm:$0xf]
    %v193 = vld [vmem:[%s2 + $0xc] sm:$0xf]
    %v194 = vld [vmem:[%s3] sm:$0x1]
    %v196 = vlaneseq
    %v197 = vshrl.u32 %v196, 7
    %v198 = vsub.s32 0, %v197
    %v199 = vrot.slane %v194, %v198
    %v205 = vunpack.c.l.b16 %v190
    %v206 = vunpack.c.l.b16 %v191
    %v207 = vunpack.c.l.b16 %v192
    %v208 = vunpack.c.l.b16 %v193
    %v209 = vpack.c.b16 %v206, %v205
    %v210 = vpack.c.b16 %v208, %v207
    %213 = vmatprep.subr.bf16.mxu0 0
    %214 = vmatpush1.bf16.msra.mxu0 0
    %215 = vmatprep.subr.bf16.mxu0 0
    %216 = vmatpush1.bf16.msra.mxu0 0
    %217 = vmatprep.subr.bf16.mxu0 0
    %218 = vmatpush1.bf16.msra.mxu0 0
    %219 = vmatprep.subr.bf16.mxu0 0
    %220 = vmatpush1.bf16.msra.mxu0 0
    %221 = vmatprep.subr.bf16.mxu0 0
    %222 = vmatpush1.bf16.msra.mxu0 0
    %223 = vmatprep.subr.bf16.mxu0 0
    %224 = vmatpush1.bf16.msra.mxu0 0
    %225 = vmatprep.subr.bf16.mxu0 0
    %226 = vmatpush1.bf16.msra.mxu0 %v210
    %227 = vmatprep.subr.bf16.mxu0 0
    %228 = vmatpush1.bf16.msra.mxu0 %v209
    %229 = vmatprep.subr.bf16.mxu0 0
    %230 = vmatpush2.bf16.msra.mxu0 0
    %231 = vmatprep.subr.bf16.mxu0 0
    %232 = vmatpush2.bf16.msra.mxu0 0
    %233 = vmatprep.subr.bf16.mxu0 0
    %234 = vmatpush2.bf16.msra.mxu0 0
    %235 = vmatprep.subr.bf16.mxu0 0
    %236 = vmatpush2.bf16.msra.mxu0 0
    %237 = vmatprep.subr.bf16.mxu0 0
    %238 = vmatpush2.bf16.msra.mxu0 0
    %239 = vmatprep.subr.bf16.mxu0 0
    %240 = vmatpush2.bf16.msra.mxu0 0
    %241 = vmatprep.subr.bf16.mxu0 0
    %242 = vmatpush2.bf16.msra.mxu0 0
    %243 = vmatprep.subr.bf16.mxu0 0
    %244 = vmatpush2.bf16.msra.mxu0 0
    %245 = vmatprep.mubr.bf16.mxu0 0
    %246 = vmatmul.mubr.bf16.gmra.mxu0 %v77
    %v247 = vpop.f32.mrf.mxu0
    %v248 = vadd.f32 %v199, %v247
    %v249 = vpop.f32.mrf.mxu0
    %v250 = vpop.f32.mrf.mxu0
    %v251 = vpop.f32.mrf.mxu0
    %252 = vdwg.mxu0
    %v253 = vmax.f32 %v248, 0.0
    %v254 = vpack.c.bf16 %v253, %v253
    %v255 = vld [vmem:[%s4] sm:$0xf]
    %v256 = vld [vmem:[%s4 + $0x4] sm:$0xf]
    %v257 = vld [vmem:[%s4 + $0x8] sm:$0xf]
    %v258 = vld [vmem:[%s4 + $0xc] sm:$0xf]
    %v259 = vld [vmem:[%s5] sm:$0x1]
    %v261 = vlaneseq
    %v262 = vshrl.u32 %v261, 7
    %v263 = vsub.s32 0, %v262
    %v264 = vrot.slane %v259, %v263
    %v270 = vunpack.c.l.b16 %v255
    %v271 = vunpack.c.l.b16 %v256
    %v272 = vunpack.c.l.b16 %v257
    %v273 = vunpack.c.l.b16 %v258
    %v274 = vpack.c.b16 %v271, %v270
    %v275 = vpack.c.b16 %v273, %v272
    %v279 = vsel %vm75, %v254, 0
    %281 = vmatprep.subr.bf16.mxu0 0
    %282 = vmatpush1.bf16.msra.mxu0 0
    %283 = vmatprep.subr.bf16.mxu0 0
    %284 = vmatpush1.bf16.msra.mxu0 0
    %285 = vmatprep.subr.bf16.mxu0 0
    %286 = vmatpush1.bf16.msra.mxu0 0
    %287 = vmatprep.subr.bf16.mxu0 0
    %288 = vmatpush1.bf16.msra.mxu0 0
    %289 = vmatprep.subr.bf16.mxu0 0
    %290 = vmatpush1.bf16.msra.mxu0 0
    %291 = vmatprep.subr.bf16.mxu0 0
    %292 = vmatpush1.bf16.msra.mxu0 0
    %293 = vmatprep.subr.bf16.mxu0 0
    %294 = vmatpush1.bf16.msra.mxu0 %v275
    %295 = vmatprep.subr.bf16.mxu0 0
    %296 = vmatpush1.bf16.msra.mxu0 %v274
    %297 = vmatprep.subr.bf16.mxu0 0
    %298 = vmatpush2.bf16.msra.mxu0 0
    %299 = vmatprep.subr.bf16.mxu0 0
    %300 = vmatpush2.bf16.msra.mxu0 0
    %301 = vmatprep.subr.bf16.mxu0 0
    %302 = vmatpush2.bf16.msra.mxu0 0
    %303 = vmatprep.subr.bf16.mxu0 0
    %304 = vmatpush2.bf16.msra.mxu0 0
    %305 = vmatprep.subr.bf16.mxu0 0
    %306 = vmatpush2.bf16.msra.mxu0 0
    %307 = vmatprep.subr.bf16.mxu0 0
    %308 = vmatpush2.bf16.msra.mxu0 0
    %309 = vmatprep.subr.bf16.mxu0 0
    %310 = vmatpush2.bf16.msra.mxu0 0
    %311 = vmatprep.subr.bf16.mxu0 0
    %312 = vmatpush2.bf16.msra.mxu0 0
    %313 = vmatprep.mubr.bf16.mxu0 0
    %314 = vmatmul.mubr.bf16.gmra.mxu0 %v279
    %v315 = vpop.f32.mrf.mxu0
    %v316 = vadd.f32 %v264, %v315
    %v317 = vpop.f32.mrf.mxu0
    %v318 = vpop.f32.mrf.mxu0
    %v319 = vpop.f32.mrf.mxu0
    %320 = vdwg.mxu0
    %vm321 = vcmp.lt.s32.totalorder %v189, 16
    %v322 = vsel %vm321, %v316, -1e+30
    %323 = vst [vmem:[%s13] sm:$0xff] %v322
    %324 = vmax.xlane.f32.xlu0 %v322
    %v325 = vpop.xlane.xlu0 %324
    %v326 = vsub.f32 %v322, %v325
    %v327 = vmul.f32 %v326, 1.442695
    %v328 = vpow.pop %v327
    %v329 = vsel %vm321, %v328, 0.0
    %330 = vadd.xlane.f32.xlu0 %v329
    %v331 = vpop.xlane.xlu0 %330
    %v332 = vrcp.pop %v331
    %v333 = vmul.f32 %v329, %v332
    %v334 = vlog2.pop %v331
    %v335 = vmul.f32 %v334, 0.6931472
    %v336 = vsub.f32 %v326, %v335
    %v337 = vmul.f32 %v333, %v336
    %v338 = vsel %vm321, %v337, 0.0
    %339 = vadd.xlane.f32.xlu0 %v338
    %v340 = vpop.xlane.xlu0 %339
    %v341 = vsub.f32 0.0, %v340
    %v342 = vld [vmem:[%s1] sm:$0xff]
    %v343 = vadd.f32 %v322, %v342
    %vm345 = vcmp.lt.s32.totalorder %v343, 0
    %v346 = vxor.u32 %v343, 2147483647
    %v347 = vsel %vm345, %v346, %v343
    %v348 = vand.u32 %v347, 4294967168
    %v349 = vsub.s32 127, %v189
    %v350 = vor.u32 %v348, %v349
    %v351 = vand.u32 %v350, 65535
    %v352 = vshra.s32 %v350, 16
    %v353 = vcvt.s32.f32 %v351
    %v354 = vcvt.s32.f32 %v352
    %355 = vmax.xlane.f32.xlu0 %v354
    %v356 = vpop.xlane.xlu0 %355
    %vm357 = vcmp.eq.f32.partialorder %v354, %v356
    %v358 = vsel %vm357, %v353, -inf
    %359 = vmax.xlane.f32.xlu0 %v358
    %v360 = vpop.xlane.xlu0 %359
    %v361 = vcvt.f32.s32 %v360
    %v362 = vcvt.f32.s32 %v356
    %v363 = vshll.u32 %v362, 16
    %v364 = vadd.s32 %v363, %v361
    %v365 = vand.u32 %v364, 127
    %v366 = vsub.s32 127, %v365
    %vm367 = vcmp.eq.s32.totalorder %v189, %v366
    %v368 = vsel %vm367, 1, 0
    %v369 = vcvt.s32.f32 %v368
    %v370 = vsel %vm321, %v336, 0.0
    %v371 = vmul.f32 %v369, %v370
    %372 = vadd.xlane.f32.xlu0 %v371
    %v373 = vpop.xlane.xlu0 %372
    %v374 = vpack.c.bf16 %v369, %v369
    %v375 = vld [vmem:[%s6] sm:$0xf]
    %v376 = vld [vmem:[%s6 + $0x4] sm:$0xf]
    %v377 = vld [vmem:[%s6 + $0x8] sm:$0xf]
    %v378 = vld [vmem:[%s6 + $0xc] sm:$0xf]
    %v379 = vld [vmem:[%s6 + $0x10] sm:$0xf]
    %v380 = vld [vmem:[%s6 + $0x14] sm:$0xf]
    %v381 = vld [vmem:[%s6 + $0x18] sm:$0xf]
    %v382 = vld [vmem:[%s6 + $0x1c] sm:$0xf]
    %v383 = vld [vmem:[%s6 + $0x20] sm:$0xf]
    %v384 = vld [vmem:[%s6 + $0x24] sm:$0xf]
    %v385 = vld [vmem:[%s6 + $0x28] sm:$0xf]
    %v386 = vld [vmem:[%s6 + $0x2c] sm:$0xf]
    %v387 = vld [vmem:[%s6 + $0x30] sm:$0xf]
    %v388 = vld [vmem:[%s6 + $0x34] sm:$0xf]
    %v389 = vld [vmem:[%s6 + $0x38] sm:$0xf]
    %v390 = vld [vmem:[%s6 + $0x3c] sm:$0xf]
    %v407 = vunpack.c.l.b16 %v375
    %v408 = vunpack.c.l.b16 %v376
    %v409 = vunpack.c.l.b16 %v377
    %v410 = vunpack.c.l.b16 %v378
    %v411 = vunpack.c.l.b16 %v379
    %v412 = vunpack.c.l.b16 %v380
    %v413 = vunpack.c.l.b16 %v381
    %v414 = vunpack.c.l.b16 %v382
    %v415 = vunpack.c.l.b16 %v383
    %v416 = vunpack.c.l.b16 %v384
    %v417 = vunpack.c.l.b16 %v385
    %v418 = vunpack.c.l.b16 %v386
    %v419 = vunpack.c.l.b16 %v387
    %v420 = vunpack.c.l.b16 %v388
    %v421 = vunpack.c.l.b16 %v389
    %v422 = vunpack.c.l.b16 %v390
    %v423 = vpack.c.b16 %v408, %v407
    %v424 = vpack.c.b16 %v410, %v409
    %v425 = vpack.c.b16 %v412, %v411
    %v426 = vpack.c.b16 %v414, %v413
    %v427 = vpack.c.b16 %v416, %v415
    %v428 = vpack.c.b16 %v418, %v417
    %v429 = vpack.c.b16 %v420, %v419
    %v430 = vpack.c.b16 %v422, %v421
    %439 = vmatprep.subr.bf16.mxu0 0
    %440 = vmatpush1.bf16.msra.mxu0 %v430
    %441 = vmatprep.subr.bf16.mxu0 0
    %442 = vmatpush1.bf16.msra.mxu0 %v429
    %443 = vmatprep.subr.bf16.mxu0 0
    %444 = vmatpush1.bf16.msra.mxu0 %v428
    %445 = vmatprep.subr.bf16.mxu0 0
    %446 = vmatpush1.bf16.msra.mxu0 %v427
    %447 = vmatprep.subr.bf16.mxu0 0
    %448 = vmatpush1.bf16.msra.mxu0 %v426
    %449 = vmatprep.subr.bf16.mxu0 0
    %450 = vmatpush1.bf16.msra.mxu0 %v425
    %451 = vmatprep.subr.bf16.mxu0 0
    %452 = vmatpush1.bf16.msra.mxu0 %v424
    %453 = vmatprep.subr.bf16.mxu0 0
    %454 = vmatpush1.bf16.msra.mxu0 %v423
    %455 = vmatprep.subr.bf16.mxu0 0
    %456 = vmatpush2.bf16.msra.mxu0 0
    %457 = vmatprep.subr.bf16.mxu0 0
    %458 = vmatpush2.bf16.msra.mxu0 0
    %459 = vmatprep.subr.bf16.mxu0 0
    %460 = vmatpush2.bf16.msra.mxu0 0
    %461 = vmatprep.subr.bf16.mxu0 0
    %462 = vmatpush2.bf16.msra.mxu0 0
    %463 = vmatprep.subr.bf16.mxu0 0
    %464 = vmatpush2.bf16.msra.mxu0 0
    %465 = vmatprep.subr.bf16.mxu0 0
    %466 = vmatpush2.bf16.msra.mxu0 0
    %467 = vmatprep.subr.bf16.mxu0 0
    %468 = vmatpush2.bf16.msra.mxu0 0
    %469 = vmatprep.subr.bf16.mxu0 0
    %470 = vmatpush2.bf16.msra.mxu0 0
    %471 = vmatprep.mubr.bf16.mxu0 0
    %472 = vmatmul.mubr.bf16.gmra.mxu0 %v374
    %v473 = vpop.f32.mrf.mxu0
    %v474 = vadd.f32 0.0, %v473
    %v475 = vpop.f32.mrf.mxu0
    %v476 = vpop.f32.mrf.mxu0
    %v477 = vpop.f32.mrf.mxu0
    %478 = vdwg.mxu0
    %v479 = vsel %vm75, %v474, 0.0
    %480 = vadd.xlane.f32.xlu0 %v479
    %v481 = vpop.xlane.xlu0 %480
    %v482 = vrcp.pop 32.0
    %v483 = vmul.f32 %v481, %v482
    %v484 = vsub.f32 %v474, %v483
    %v485 = vmul.f32 %v484, %v484
    %v486 = vsel %vm75, %v485, 0.0
    %487 = vadd.xlane.f32.xlu0 %v486
    %v488 = vpop.xlane.xlu0 %487
    %v489 = vmul.f32 %v488, %v482
    %v490 = vadd.f32 %v489, 1e-05
    %v491 = vrsqrt.pop %v490
    %v492 = vmul.f32 %v484, %v491
    %v493 = vld [vmem:[%s7] sm:$0x1]
    %v495 = vlaneseq
    %v496 = vshrl.u32 %v495, 7
    %v497 = vsub.s32 0, %v496
    %v498 = vrot.slane %v493, %v497
    %v500 = vmul.f32 %v498, %v492
    %v501 = vadd.f32 %v50, %v500
    %v502 = vld [vmem:[%s8] sm:$0x1]
    %v504 = vlaneseq
    %v505 = vshrl.u32 %v504, 7
    %v506 = vsub.s32 0, %v505
    %v507 = vrot.slane %v502, %v506
    %v509 = vadd.f32 %v501, %v507
    %vm510 = vcmp.eq.s32.totalorder %v189, 0
    %v511 = vcvt.s32.f32 %v366
    %vm512 = vcmp.eq.s32.totalorder %v189, 1
    %vm513 = vcmp.eq.s32.totalorder %v189, 2
    %v514 = vsel %vm513, %v341, 0.0
    %v515 = vsel %vm512, %v373, %v514
    %v516 = vsel %vm510, %v511, %v515
    %517 = vst [vmem:[%s14] sm:$0xff] %v516
    %v518 = vpack.c.bf16 %v509, %v509
    %s519 = scalar_lea.vmem %s2, 16
    %v520 = vld [vmem:[%s519] sm:$0xf]
    %v521 = vld [vmem:[%s519 + $0x4] sm:$0xf]
    %v522 = vld [vmem:[%s519 + $0x8] sm:$0xf]
    %v523 = vld [vmem:[%s519 + $0xc] sm:$0xf]
    %s524 = scalar_lea.vmem %s3, 1
    %v525 = vld [vmem:[%s524] sm:$0x1]
    %v527 = vlaneseq
    %v528 = vshrl.u32 %v527, 7
    %v529 = vsub.s32 0, %v528
    %v530 = vrot.slane %v525, %v529
    %v536 = vunpack.c.l.b16 %v520
    %v537 = vunpack.c.l.b16 %v521
    %v538 = vunpack.c.l.b16 %v522
    %v539 = vunpack.c.l.b16 %v523
    %v540 = vpack.c.b16 %v537, %v536
    %v541 = vpack.c.b16 %v539, %v538
    %v545 = vsel %vm75, %v518, 0
    %547 = vmatprep.subr.bf16.mxu0 0
    %548 = vmatpush1.bf16.msra.mxu0 0
    %549 = vmatprep.subr.bf16.mxu0 0
    %550 = vmatpush1.bf16.msra.mxu0 0
    %551 = vmatprep.subr.bf16.mxu0 0
    %552 = vmatpush1.bf16.msra.mxu0 0
    %553 = vmatprep.subr.bf16.mxu0 0
    %554 = vmatpush1.bf16.msra.mxu0 0
    %555 = vmatprep.subr.bf16.mxu0 0
    %556 = vmatpush1.bf16.msra.mxu0 0
    %557 = vmatprep.subr.bf16.mxu0 0
    %558 = vmatpush1.bf16.msra.mxu0 0
    %559 = vmatprep.subr.bf16.mxu0 0
    %560 = vmatpush1.bf16.msra.mxu0 %v541
    %561 = vmatprep.subr.bf16.mxu0 0
    %562 = vmatpush1.bf16.msra.mxu0 %v540
    %563 = vmatprep.subr.bf16.mxu0 0
    %564 = vmatpush2.bf16.msra.mxu0 0
    %565 = vmatprep.subr.bf16.mxu0 0
    %566 = vmatpush2.bf16.msra.mxu0 0
    %567 = vmatprep.subr.bf16.mxu0 0
    %568 = vmatpush2.bf16.msra.mxu0 0
    %569 = vmatprep.subr.bf16.mxu0 0
    %570 = vmatpush2.bf16.msra.mxu0 0
    %571 = vmatprep.subr.bf16.mxu0 0
    %572 = vmatpush2.bf16.msra.mxu0 0
    %573 = vmatprep.subr.bf16.mxu0 0
    %574 = vmatpush2.bf16.msra.mxu0 0
    %575 = vmatprep.subr.bf16.mxu0 0
    %576 = vmatpush2.bf16.msra.mxu0 0
    %577 = vmatprep.subr.bf16.mxu0 0
    %578 = vmatpush2.bf16.msra.mxu0 0
    %579 = vmatprep.mubr.bf16.mxu0 0
    %580 = vmatmul.mubr.bf16.gmra.mxu0 %v545
    %v581 = vpop.f32.mrf.mxu0
    %v582 = vadd.f32 %v530, %v581
    %v583 = vpop.f32.mrf.mxu0
    %v584 = vpop.f32.mrf.mxu0
    %v585 = vpop.f32.mrf.mxu0
    %586 = vdwg.mxu0
    %v587 = vmax.f32 %v582, 0.0
    %v588 = vpack.c.bf16 %v587, %v587
    %s589 = scalar_lea.vmem %s4, 16
    %v590 = vld [vmem:[%s589] sm:$0xf]
    %v591 = vld [vmem:[%s589 + $0x4] sm:$0xf]
    %v592 = vld [vmem:[%s589 + $0x8] sm:$0xf]
    %v593 = vld [vmem:[%s589 + $0xc] sm:$0xf]
    %s594 = scalar_lea.vmem %s5, 1
    %v595 = vld [vmem:[%s594] sm:$0x1]
    %v597 = vlaneseq
    %v598 = vshrl.u32 %v597, 7
    %v599 = vsub.s32 0, %v598
    %v600 = vrot.slane %v595, %v599
    %v606 = vunpack.c.l.b16 %v590
    %v607 = vunpack.c.l.b16 %v591
    %v608 = vunpack.c.l.b16 %v592
    %v609 = vunpack.c.l.b16 %v593
    %v610 = vpack.c.b16 %v607, %v606
    %v611 = vpack.c.b16 %v609, %v608
    %v615 = vsel %vm75, %v588, 0
    %617 = vmatprep.subr.bf16.mxu0 0
    %618 = vmatpush1.bf16.msra.mxu0 0
    %619 = vmatprep.subr.bf16.mxu0 0
    %620 = vmatpush1.bf16.msra.mxu0 0
    %621 = vmatprep.subr.bf16.mxu0 0
    %622 = vmatpush1.bf16.msra.mxu0 0
    %623 = vmatprep.subr.bf16.mxu0 0
    %624 = vmatpush1.bf16.msra.mxu0 0
    %625 = vmatprep.subr.bf16.mxu0 0
    %626 = vmatpush1.bf16.msra.mxu0 0
    %627 = vmatprep.subr.bf16.mxu0 0
    %628 = vmatpush1.bf16.msra.mxu0 0
    %629 = vmatprep.subr.bf16.mxu0 0
    %630 = vmatpush1.bf16.msra.mxu0 %v611
    %631 = vmatprep.subr.bf16.mxu0 0
    %632 = vmatpush1.bf16.msra.mxu0 %v610
    %633 = vmatprep.subr.bf16.mxu0 0
    %634 = vmatpush2.bf16.msra.mxu0 0
    %635 = vmatprep.subr.bf16.mxu0 0
    %636 = vmatpush2.bf16.msra.mxu0 0
    %637 = vmatprep.subr.bf16.mxu0 0
    %638 = vmatpush2.bf16.msra.mxu0 0
    %639 = vmatprep.subr.bf16.mxu0 0
    %640 = vmatpush2.bf16.msra.mxu0 0
    %641 = vmatprep.subr.bf16.mxu0 0
    %642 = vmatpush2.bf16.msra.mxu0 0
    %643 = vmatprep.subr.bf16.mxu0 0
    %644 = vmatpush2.bf16.msra.mxu0 0
    %645 = vmatprep.subr.bf16.mxu0 0
    %646 = vmatpush2.bf16.msra.mxu0 0
    %647 = vmatprep.subr.bf16.mxu0 0
    %648 = vmatpush2.bf16.msra.mxu0 0
    %649 = vmatprep.mubr.bf16.mxu0 0
    %650 = vmatmul.mubr.bf16.gmra.mxu0 %v615
    %v651 = vpop.f32.mrf.mxu0
    %v652 = vadd.f32 %v600, %v651
    %v653 = vpop.f32.mrf.mxu0
    %v654 = vpop.f32.mrf.mxu0
    %v655 = vpop.f32.mrf.mxu0
    %656 = vdwg.mxu0
    %vm657 = vcmp.lt.s32.totalorder %v189, 12
    %v658 = vsel %vm657, %v652, -1e+30
    %s659 = scalar_lea.vmem %s13, 8
    %660 = vst [vmem:[%s659] sm:$0xff] %v658
    %661 = vmax.xlane.f32.xlu0 %v658
    %v662 = vpop.xlane.xlu0 %661
    %v663 = vsub.f32 %v658, %v662
    %v664 = vmul.f32 %v663, 1.442695
    %v665 = vpow.pop %v664
    %v666 = vsel %vm657, %v665, 0.0
    %667 = vadd.xlane.f32.xlu0 %v666
    %v668 = vpop.xlane.xlu0 %667
    %v669 = vrcp.pop %v668
    %v670 = vmul.f32 %v666, %v669
    %v671 = vlog2.pop %v668
    %v672 = vmul.f32 %v671, 0.6931472
    %v673 = vsub.f32 %v663, %v672
    %v674 = vmul.f32 %v670, %v673
    %v675 = vsel %vm657, %v674, 0.0
    %676 = vadd.xlane.f32.xlu0 %v675
    %v677 = vpop.xlane.xlu0 %676
    %v678 = vsub.f32 0.0, %v677
    %s679 = scalar_lea.vmem %s1, 8
    %v680 = vld [vmem:[%s679] sm:$0xff]
    %v681 = vadd.f32 %v658, %v680
    %vm683 = vcmp.lt.s32.totalorder %v681, 0
    %v684 = vxor.u32 %v681, 2147483647
    %v685 = vsel %vm683, %v684, %v681
    %v686 = vand.u32 %v685, 4294967168
    %v687 = vor.u32 %v686, %v349
    %v688 = vand.u32 %v687, 65535
    %v689 = vshra.s32 %v687, 16
    %v690 = vcvt.s32.f32 %v688
    %v691 = vcvt.s32.f32 %v689
    %692 = vmax.xlane.f32.xlu0 %v691
    %v693 = vpop.xlane.xlu0 %692
    %vm694 = vcmp.eq.f32.partialorder %v691, %v693
    %v695 = vsel %vm694, %v690, -inf
    %696 = vmax.xlane.f32.xlu0 %v695
    %v697 = vpop.xlane.xlu0 %696
    %v698 = vcvt.f32.s32 %v697
    %v699 = vcvt.f32.s32 %v693
    %v700 = vshll.u32 %v699, 16
    %v701 = vadd.s32 %v700, %v698
    %v702 = vand.u32 %v701, 127
    %v703 = vsub.s32 127, %v702
    %vm704 = vcmp.eq.s32.totalorder %v189, %v703
    %v705 = vsel %vm704, 1, 0
    %v706 = vcvt.s32.f32 %v705
    %v707 = vsel %vm657, %v673, 0.0
    %v708 = vmul.f32 %v706, %v707
    %709 = vadd.xlane.f32.xlu0 %v708
    %v710 = vpop.xlane.xlu0 %709
    %v711 = vpack.c.bf16 %v706, %v706
    %s712 = scalar_lea.vmem %s6, 64
    %v713 = vld [vmem:[%s712] sm:$0xf]
    %v714 = vld [vmem:[%s712 + $0x4] sm:$0xf]
    %v715 = vld [vmem:[%s712 + $0x8] sm:$0xf]
    %v716 = vld [vmem:[%s712 + $0xc] sm:$0xf]
    %v717 = vld [vmem:[%s712 + $0x10] sm:$0xf]
    %v718 = vld [vmem:[%s712 + $0x14] sm:$0xf]
    %v719 = vld [vmem:[%s712 + $0x18] sm:$0xf]
    %v720 = vld [vmem:[%s712 + $0x1c] sm:$0xf]
    %v721 = vld [vmem:[%s712 + $0x20] sm:$0xf]
    %v722 = vld [vmem:[%s712 + $0x24] sm:$0xf]
    %v723 = vld [vmem:[%s712 + $0x28] sm:$0xf]
    %v724 = vld [vmem:[%s712 + $0x2c] sm:$0xf]
    %v725 = vld [vmem:[%s712 + $0x30] sm:$0xf]
    %v726 = vld [vmem:[%s712 + $0x34] sm:$0xf]
    %v727 = vld [vmem:[%s712 + $0x38] sm:$0xf]
    %v728 = vld [vmem:[%s712 + $0x3c] sm:$0xf]
    %v745 = vunpack.c.l.b16 %v713
    %v746 = vunpack.c.l.b16 %v714
    %v747 = vunpack.c.l.b16 %v715
    %v748 = vunpack.c.l.b16 %v716
    %v749 = vunpack.c.l.b16 %v717
    %v750 = vunpack.c.l.b16 %v718
    %v751 = vunpack.c.l.b16 %v719
    %v752 = vunpack.c.l.b16 %v720
    %v753 = vunpack.c.l.b16 %v721
    %v754 = vunpack.c.l.b16 %v722
    %v755 = vunpack.c.l.b16 %v723
    %v756 = vunpack.c.l.b16 %v724
    %v757 = vunpack.c.l.b16 %v725
    %v758 = vunpack.c.l.b16 %v726
    %v759 = vunpack.c.l.b16 %v727
    %v760 = vunpack.c.l.b16 %v728
    %v761 = vpack.c.b16 %v746, %v745
    %v762 = vpack.c.b16 %v748, %v747
    %v763 = vpack.c.b16 %v750, %v749
    %v764 = vpack.c.b16 %v752, %v751
    %v765 = vpack.c.b16 %v754, %v753
    %v766 = vpack.c.b16 %v756, %v755
    %v767 = vpack.c.b16 %v758, %v757
    %v768 = vpack.c.b16 %v760, %v759
    %777 = vmatprep.subr.bf16.mxu0 0
    %778 = vmatpush1.bf16.msra.mxu0 %v768
    %779 = vmatprep.subr.bf16.mxu0 0
    %780 = vmatpush1.bf16.msra.mxu0 %v767
    %781 = vmatprep.subr.bf16.mxu0 0
    %782 = vmatpush1.bf16.msra.mxu0 %v766
    %783 = vmatprep.subr.bf16.mxu0 0
    %784 = vmatpush1.bf16.msra.mxu0 %v765
    %785 = vmatprep.subr.bf16.mxu0 0
    %786 = vmatpush1.bf16.msra.mxu0 %v764
    %787 = vmatprep.subr.bf16.mxu0 0
    %788 = vmatpush1.bf16.msra.mxu0 %v763
    %789 = vmatprep.subr.bf16.mxu0 0
    %790 = vmatpush1.bf16.msra.mxu0 %v762
    %791 = vmatprep.subr.bf16.mxu0 0
    %792 = vmatpush1.bf16.msra.mxu0 %v761
    %793 = vmatprep.subr.bf16.mxu0 0
    %794 = vmatpush2.bf16.msra.mxu0 0
    %795 = vmatprep.subr.bf16.mxu0 0
    %796 = vmatpush2.bf16.msra.mxu0 0
    %797 = vmatprep.subr.bf16.mxu0 0
    %798 = vmatpush2.bf16.msra.mxu0 0
    %799 = vmatprep.subr.bf16.mxu0 0
    %800 = vmatpush2.bf16.msra.mxu0 0
    %801 = vmatprep.subr.bf16.mxu0 0
    %802 = vmatpush2.bf16.msra.mxu0 0
    %803 = vmatprep.subr.bf16.mxu0 0
    %804 = vmatpush2.bf16.msra.mxu0 0
    %805 = vmatprep.subr.bf16.mxu0 0
    %806 = vmatpush2.bf16.msra.mxu0 0
    %807 = vmatprep.subr.bf16.mxu0 0
    %808 = vmatpush2.bf16.msra.mxu0 0
    %809 = vmatprep.mubr.bf16.mxu0 0
    %810 = vmatmul.mubr.bf16.gmra.mxu0 %v711
    %v811 = vpop.f32.mrf.mxu0
    %v812 = vadd.f32 0.0, %v811
    %v813 = vpop.f32.mrf.mxu0
    %v814 = vpop.f32.mrf.mxu0
    %v815 = vpop.f32.mrf.mxu0
    %816 = vdwg.mxu0
    %v817 = vsel %vm75, %v812, 0.0
    %818 = vadd.xlane.f32.xlu0 %v817
    %v819 = vpop.xlane.xlu0 %818
    %v820 = vmul.f32 %v819, %v482
    %v821 = vsub.f32 %v812, %v820
    %v822 = vmul.f32 %v821, %v821
    %v823 = vsel %vm75, %v822, 0.0
    %824 = vadd.xlane.f32.xlu0 %v823
    %v825 = vpop.xlane.xlu0 %824
    %v826 = vmul.f32 %v825, %v482
    %v827 = vadd.f32 %v826, 1e-05
    %v828 = vrsqrt.pop %v827
    %v829 = vmul.f32 %v821, %v828
    %s830 = scalar_lea.vmem %s7, 1
    %v831 = vld [vmem:[%s830] sm:$0x1]
    %v833 = vlaneseq
    %v834 = vshrl.u32 %v833, 7
    %v835 = vsub.s32 0, %v834
    %v836 = vrot.slane %v831, %v835
    %v838 = vmul.f32 %v836, %v829
    %v839 = vadd.f32 %v509, %v838
    %s840 = scalar_lea.vmem %s8, 1
    %v841 = vld [vmem:[%s840] sm:$0x1]
    %v843 = vlaneseq
    %v844 = vshrl.u32 %v843, 7
    %v845 = vsub.s32 0, %v844
    %v846 = vrot.slane %v841, %v845
    %v848 = vadd.f32 %v839, %v846
    %v849 = vcvt.s32.f32 %v703
    %v850 = vsel %vm513, %v678, 0.0
    %v851 = vsel %vm512, %v710, %v850
    %v852 = vsel %vm510, %v849, %v851
    %s853 = scalar_lea.vmem %s14, 8
    %854 = vst [vmem:[%s853] sm:$0xff] %v852
    %v855 = vpack.c.bf16 %v848, %v848
    %s856 = scalar_lea.vmem %s2, 32
    %v857 = vld [vmem:[%s856] sm:$0xf]
    %v858 = vld [vmem:[%s856 + $0x4] sm:$0xf]
    %v859 = vld [vmem:[%s856 + $0x8] sm:$0xf]
    %v860 = vld [vmem:[%s856 + $0xc] sm:$0xf]
    %s861 = scalar_lea.vmem %s3, 2
    %v862 = vld [vmem:[%s861] sm:$0x1]
    %v864 = vlaneseq
    %v865 = vshrl.u32 %v864, 7
    %v866 = vsub.s32 0, %v865
    %v867 = vrot.slane %v862, %v866
    %v873 = vunpack.c.l.b16 %v857
    %v874 = vunpack.c.l.b16 %v858
    %v875 = vunpack.c.l.b16 %v859
    %v876 = vunpack.c.l.b16 %v860
    %v877 = vpack.c.b16 %v874, %v873
    %v878 = vpack.c.b16 %v876, %v875
    %v882 = vsel %vm75, %v855, 0
    %884 = vmatprep.subr.bf16.mxu0 0
    %885 = vmatpush1.bf16.msra.mxu0 0
    %886 = vmatprep.subr.bf16.mxu0 0
    %887 = vmatpush1.bf16.msra.mxu0 0
    %888 = vmatprep.subr.bf16.mxu0 0
    %889 = vmatpush1.bf16.msra.mxu0 0
    %890 = vmatprep.subr.bf16.mxu0 0
    %891 = vmatpush1.bf16.msra.mxu0 0
    %892 = vmatprep.subr.bf16.mxu0 0
    %893 = vmatpush1.bf16.msra.mxu0 0
    %894 = vmatprep.subr.bf16.mxu0 0
    %895 = vmatpush1.bf16.msra.mxu0 0
    %896 = vmatprep.subr.bf16.mxu0 0
    %897 = vmatpush1.bf16.msra.mxu0 %v878
    %898 = vmatprep.subr.bf16.mxu0 0
    %899 = vmatpush1.bf16.msra.mxu0 %v877
    %900 = vmatprep.subr.bf16.mxu0 0
    %901 = vmatpush2.bf16.msra.mxu0 0
    %902 = vmatprep.subr.bf16.mxu0 0
    %903 = vmatpush2.bf16.msra.mxu0 0
    %904 = vmatprep.subr.bf16.mxu0 0
    %905 = vmatpush2.bf16.msra.mxu0 0
    %906 = vmatprep.subr.bf16.mxu0 0
    %907 = vmatpush2.bf16.msra.mxu0 0
    %908 = vmatprep.subr.bf16.mxu0 0
    %909 = vmatpush2.bf16.msra.mxu0 0
    %910 = vmatprep.subr.bf16.mxu0 0
    %911 = vmatpush2.bf16.msra.mxu0 0
    %912 = vmatprep.subr.bf16.mxu0 0
    %913 = vmatpush2.bf16.msra.mxu0 0
    %914 = vmatprep.subr.bf16.mxu0 0
    %915 = vmatpush2.bf16.msra.mxu0 0
    %916 = vmatprep.mubr.bf16.mxu0 0
    %917 = vmatmul.mubr.bf16.gmra.mxu0 %v882
    %v918 = vpop.f32.mrf.mxu0
    %v919 = vadd.f32 %v867, %v918
    %v920 = vpop.f32.mrf.mxu0
    %v921 = vpop.f32.mrf.mxu0
    %v922 = vpop.f32.mrf.mxu0
    %923 = vdwg.mxu0
    %v924 = vmax.f32 %v919, 0.0
    %v925 = vpack.c.bf16 %v924, %v924
    %s926 = scalar_lea.vmem %s4, 32
    %v927 = vld [vmem:[%s926] sm:$0xf]
    %v928 = vld [vmem:[%s926 + $0x4] sm:$0xf]
    %v929 = vld [vmem:[%s926 + $0x8] sm:$0xf]
    %v930 = vld [vmem:[%s926 + $0xc] sm:$0xf]
    %s931 = scalar_lea.vmem %s5, 2
    %v932 = vld [vmem:[%s931] sm:$0x1]
    %v934 = vlaneseq
    %v935 = vshrl.u32 %v934, 7
    %v936 = vsub.s32 0, %v935
    %v937 = vrot.slane %v932, %v936
    %v943 = vunpack.c.l.b16 %v927
    %v944 = vunpack.c.l.b16 %v928
    %v945 = vunpack.c.l.b16 %v929
    %v946 = vunpack.c.l.b16 %v930
    %v947 = vpack.c.b16 %v944, %v943
    %v948 = vpack.c.b16 %v946, %v945
    %v952 = vsel %vm75, %v925, 0
    %954 = vmatprep.subr.bf16.mxu0 0
    %955 = vmatpush1.bf16.msra.mxu0 0
    %956 = vmatprep.subr.bf16.mxu0 0
    %957 = vmatpush1.bf16.msra.mxu0 0
    %958 = vmatprep.subr.bf16.mxu0 0
    %959 = vmatpush1.bf16.msra.mxu0 0
    %960 = vmatprep.subr.bf16.mxu0 0
    %961 = vmatpush1.bf16.msra.mxu0 0
    %962 = vmatprep.subr.bf16.mxu0 0
    %963 = vmatpush1.bf16.msra.mxu0 0
    %964 = vmatprep.subr.bf16.mxu0 0
    %965 = vmatpush1.bf16.msra.mxu0 0
    %966 = vmatprep.subr.bf16.mxu0 0
    %967 = vmatpush1.bf16.msra.mxu0 %v948
    %968 = vmatprep.subr.bf16.mxu0 0
    %969 = vmatpush1.bf16.msra.mxu0 %v947
    %970 = vmatprep.subr.bf16.mxu0 0
    %971 = vmatpush2.bf16.msra.mxu0 0
    %972 = vmatprep.subr.bf16.mxu0 0
    %973 = vmatpush2.bf16.msra.mxu0 0
    %974 = vmatprep.subr.bf16.mxu0 0
    %975 = vmatpush2.bf16.msra.mxu0 0
    %976 = vmatprep.subr.bf16.mxu0 0
    %977 = vmatpush2.bf16.msra.mxu0 0
    %978 = vmatprep.subr.bf16.mxu0 0
    %979 = vmatpush2.bf16.msra.mxu0 0
    %980 = vmatprep.subr.bf16.mxu0 0
    %981 = vmatpush2.bf16.msra.mxu0 0
    %982 = vmatprep.subr.bf16.mxu0 0
    %983 = vmatpush2.bf16.msra.mxu0 0
    %984 = vmatprep.subr.bf16.mxu0 0
    %985 = vmatpush2.bf16.msra.mxu0 0
    %986 = vmatprep.mubr.bf16.mxu0 0
    %987 = vmatmul.mubr.bf16.gmra.mxu0 %v952
    %v988 = vpop.f32.mrf.mxu0
    %v989 = vadd.f32 %v937, %v988
    %v990 = vpop.f32.mrf.mxu0
    %v991 = vpop.f32.mrf.mxu0
    %v992 = vpop.f32.mrf.mxu0
    %993 = vdwg.mxu0
    %vm994 = vcmp.lt.s32.totalorder %v189, 7
    %v995 = vsel %vm994, %v989, -1e+30
    %s996 = scalar_lea.vmem %s13, 16
    %997 = vst [vmem:[%s996] sm:$0xff] %v995
    %998 = vmax.xlane.f32.xlu0 %v995
    %v999 = vpop.xlane.xlu0 %998
    %v1000 = vsub.f32 %v995, %v999
    %v1001 = vmul.f32 %v1000, 1.442695
    %v1002 = vpow.pop %v1001
    %v1003 = vsel %vm994, %v1002, 0.0
    %1004 = vadd.xlane.f32.xlu0 %v1003
    %v1005 = vpop.xlane.xlu0 %1004
    %v1006 = vrcp.pop %v1005
    %v1007 = vmul.f32 %v1003, %v1006
    %v1008 = vlog2.pop %v1005
    %v1009 = vmul.f32 %v1008, 0.6931472
    %v1010 = vsub.f32 %v1000, %v1009
    %v1011 = vmul.f32 %v1007, %v1010
    %v1012 = vsel %vm994, %v1011, 0.0
    %1013 = vadd.xlane.f32.xlu0 %v1012
    %v1014 = vpop.xlane.xlu0 %1013
    %v1015 = vsub.f32 0.0, %v1014
    %s1016 = scalar_lea.vmem %s1, 16
    %v1017 = vld [vmem:[%s1016] sm:$0xff]
    %v1018 = vadd.f32 %v995, %v1017
    %vm1020 = vcmp.lt.s32.totalorder %v1018, 0
    %v1021 = vxor.u32 %v1018, 2147483647
    %v1022 = vsel %vm1020, %v1021, %v1018
    %v1023 = vand.u32 %v1022, 4294967168
    %v1024 = vor.u32 %v1023, %v349
    %v1025 = vand.u32 %v1024, 65535
    %v1026 = vshra.s32 %v1024, 16
    %v1027 = vcvt.s32.f32 %v1025
    %v1028 = vcvt.s32.f32 %v1026
    %1029 = vmax.xlane.f32.xlu0 %v1028
    %v1030 = vpop.xlane.xlu0 %1029
    %vm1031 = vcmp.eq.f32.partialorder %v1028, %v1030
    %v1032 = vsel %vm1031, %v1027, -inf
    %1033 = vmax.xlane.f32.xlu0 %v1032
    %v1034 = vpop.xlane.xlu0 %1033
    %v1035 = vcvt.f32.s32 %v1034
    %v1036 = vcvt.f32.s32 %v1030
    %v1037 = vshll.u32 %v1036, 16
    %v1038 = vadd.s32 %v1037, %v1035
    %v1039 = vand.u32 %v1038, 127
    %v1040 = vsub.s32 127, %v1039
    %vm1041 = vcmp.eq.s32.totalorder %v189, %v1040
    %v1042 = vsel %vm1041, 1, 0
    %v1043 = vcvt.s32.f32 %v1042
    %v1044 = vsel %vm994, %v1010, 0.0
    %v1045 = vmul.f32 %v1043, %v1044
    %1046 = vadd.xlane.f32.xlu0 %v1045
    %v1047 = vpop.xlane.xlu0 %1046
    %v1048 = vpack.c.bf16 %v1043, %v1043
    %s1049 = scalar_lea.vmem %s6, 128
    %v1050 = vld [vmem:[%s1049] sm:$0xf]
    %v1051 = vld [vmem:[%s1049 + $0x4] sm:$0xf]
    %v1052 = vld [vmem:[%s1049 + $0x8] sm:$0xf]
    %v1053 = vld [vmem:[%s1049 + $0xc] sm:$0xf]
    %v1054 = vld [vmem:[%s1049 + $0x10] sm:$0xf]
    %v1055 = vld [vmem:[%s1049 + $0x14] sm:$0xf]
    %v1056 = vld [vmem:[%s1049 + $0x18] sm:$0xf]
    %v1057 = vld [vmem:[%s1049 + $0x1c] sm:$0xf]
    %v1058 = vld [vmem:[%s1049 + $0x20] sm:$0xf]
    %v1059 = vld [vmem:[%s1049 + $0x24] sm:$0xf]
    %v1060 = vld [vmem:[%s1049 + $0x28] sm:$0xf]
    %v1061 = vld [vmem:[%s1049 + $0x2c] sm:$0xf]
    %v1062 = vld [vmem:[%s1049 + $0x30] sm:$0xf]
    %v1063 = vld [vmem:[%s1049 + $0x34] sm:$0xf]
    %v1064 = vld [vmem:[%s1049 + $0x38] sm:$0xf]
    %v1065 = vld [vmem:[%s1049 + $0x3c] sm:$0xf]
    %v1082 = vunpack.c.l.b16 %v1050
    %v1083 = vunpack.c.l.b16 %v1051
    %v1084 = vunpack.c.l.b16 %v1052
    %v1085 = vunpack.c.l.b16 %v1053
    %v1086 = vunpack.c.l.b16 %v1054
    %v1087 = vunpack.c.l.b16 %v1055
    %v1088 = vunpack.c.l.b16 %v1056
    %v1089 = vunpack.c.l.b16 %v1057
    %v1090 = vunpack.c.l.b16 %v1058
    %v1091 = vunpack.c.l.b16 %v1059
    %v1092 = vunpack.c.l.b16 %v1060
    %v1093 = vunpack.c.l.b16 %v1061
    %v1094 = vunpack.c.l.b16 %v1062
    %v1095 = vunpack.c.l.b16 %v1063
    %v1096 = vunpack.c.l.b16 %v1064
    %v1097 = vunpack.c.l.b16 %v1065
    %v1098 = vpack.c.b16 %v1083, %v1082
    %v1099 = vpack.c.b16 %v1085, %v1084
    %v1100 = vpack.c.b16 %v1087, %v1086
    %v1101 = vpack.c.b16 %v1089, %v1088
    %v1102 = vpack.c.b16 %v1091, %v1090
    %v1103 = vpack.c.b16 %v1093, %v1092
    %v1104 = vpack.c.b16 %v1095, %v1094
    %v1105 = vpack.c.b16 %v1097, %v1096
    %1114 = vmatprep.subr.bf16.mxu0 0
    %1115 = vmatpush1.bf16.msra.mxu0 %v1105
    %1116 = vmatprep.subr.bf16.mxu0 0
    %1117 = vmatpush1.bf16.msra.mxu0 %v1104
    %1118 = vmatprep.subr.bf16.mxu0 0
    %1119 = vmatpush1.bf16.msra.mxu0 %v1103
    %1120 = vmatprep.subr.bf16.mxu0 0
    %1121 = vmatpush1.bf16.msra.mxu0 %v1102
    %1122 = vmatprep.subr.bf16.mxu0 0
    %1123 = vmatpush1.bf16.msra.mxu0 %v1101
    %1124 = vmatprep.subr.bf16.mxu0 0
    %1125 = vmatpush1.bf16.msra.mxu0 %v1100
    %1126 = vmatprep.subr.bf16.mxu0 0
    %1127 = vmatpush1.bf16.msra.mxu0 %v1099
    %1128 = vmatprep.subr.bf16.mxu0 0
    %1129 = vmatpush1.bf16.msra.mxu0 %v1098
    %1130 = vmatprep.subr.bf16.mxu0 0
    %1131 = vmatpush2.bf16.msra.mxu0 0
    %1132 = vmatprep.subr.bf16.mxu0 0
    %1133 = vmatpush2.bf16.msra.mxu0 0
    %1134 = vmatprep.subr.bf16.mxu0 0
    %1135 = vmatpush2.bf16.msra.mxu0 0
    %1136 = vmatprep.subr.bf16.mxu0 0
    %1137 = vmatpush2.bf16.msra.mxu0 0
    %1138 = vmatprep.subr.bf16.mxu0 0
    %1139 = vmatpush2.bf16.msra.mxu0 0
    %1140 = vmatprep.subr.bf16.mxu0 0
    %1141 = vmatpush2.bf16.msra.mxu0 0
    %1142 = vmatprep.subr.bf16.mxu0 0
    %1143 = vmatpush2.bf16.msra.mxu0 0
    %1144 = vmatprep.subr.bf16.mxu0 0
    %1145 = vmatpush2.bf16.msra.mxu0 0
    %1146 = vmatprep.mubr.bf16.mxu0 0
    %1147 = vmatmul.mubr.bf16.gmra.mxu0 %v1048
    %v1148 = vpop.f32.mrf.mxu0
    %v1149 = vadd.f32 0.0, %v1148
    %v1150 = vpop.f32.mrf.mxu0
    %v1151 = vpop.f32.mrf.mxu0
    %v1152 = vpop.f32.mrf.mxu0
    %1153 = vdwg.mxu0
    %v1154 = vsel %vm75, %v1149, 0.0
    %1155 = vadd.xlane.f32.xlu0 %v1154
    %v1156 = vpop.xlane.xlu0 %1155
    %v1157 = vmul.f32 %v1156, %v482
    %v1158 = vsub.f32 %v1149, %v1157
    %v1159 = vmul.f32 %v1158, %v1158
    %v1160 = vsel %vm75, %v1159, 0.0
    %1161 = vadd.xlane.f32.xlu0 %v1160
    %v1162 = vpop.xlane.xlu0 %1161
    %v1163 = vmul.f32 %v1162, %v482
    %v1164 = vadd.f32 %v1163, 1e-05
    %v1165 = vrsqrt.pop %v1164
    %v1166 = vmul.f32 %v1158, %v1165
    %s1167 = scalar_lea.vmem %s7, 2
    %v1168 = vld [vmem:[%s1167] sm:$0x1]
    %v1170 = vlaneseq
    %v1171 = vshrl.u32 %v1170, 7
    %v1172 = vsub.s32 0, %v1171
    %v1173 = vrot.slane %v1168, %v1172
    %v1175 = vmul.f32 %v1173, %v1166
    %v1176 = vadd.f32 %v848, %v1175
    %s1177 = scalar_lea.vmem %s8, 2
    %v1178 = vld [vmem:[%s1177] sm:$0x1]
    %v1180 = vlaneseq
    %v1181 = vshrl.u32 %v1180, 7
    %v1182 = vsub.s32 0, %v1181
    %v1183 = vrot.slane %v1178, %v1182
    %v1185 = vadd.f32 %v1176, %v1183
    %v1186 = vcvt.s32.f32 %v1040
    %v1187 = vsel %vm513, %v1015, 0.0
    %v1188 = vsel %vm512, %v1047, %v1187
    %v1189 = vsel %vm510, %v1186, %v1188
    %s1190 = scalar_lea.vmem %s14, 16
    %1191 = vst [vmem:[%s1190] sm:$0xff] %v1189
    %1192 = vst.msk [vmem:[#allocation2] sm:$0xff] %vm75, %v1185
    // Predicated region
    $region54: #{_fused_forward.1} parent=1 // pred_check
      _
    $region55: #{_fused_forward.1} parent=1 // pred_check_branch
      %1194 = sbr.rel (0) target = $region57
    $region56: #{_fused_forward.1} parent=1 // pred_region
      _
    $region57: #{_fused_forward.1} parent=1 // pred_fallthru
      _
    // Predicated region
    $region58: #{_fused_forward.1} parent=1 // pred_check
      _
    $region59: #{_fused_forward.1} parent=1 // pred_check_branch
      %1196 = sbr.rel (0) target = $region61
    $region60: #{_fused_forward.1} parent=1 // pred_region
      _
    $region61: #{_fused_forward.1} parent=1 // pred_fallthru
      _
    // Predicated region
    $region62: #{_fused_forward.1} parent=1 // pred_check
      _
    $region63: #{_fused_forward.1} parent=1 // pred_check_branch
      %1198 = sbr.rel (0) target = $region65
    $region64: #{_fused_forward.1} parent=1 // pred_region
      %s1200 = ssub.s32 128, 128
      %1201 = vsyncadd [#allocation3], %s1200
      %s1203 = sshll.u32 [#allocation2], 4
      %s1204 = int_to_ptr.vmem [resolvable:$true] %s1203
      %1206 = dma.vmem_to_hbm [thread:$0]  %s1204, 128, %s15, [#allocation3]
    $region65: #{_fused_forward.1} parent=1 // pred_fallthru
      _
    // Predicated region
    $region66: #{_fused_forward.1} parent=1 // pred_check
      _
    $region67: #{_fused_forward.1} parent=1 // pred_check_branch
      %1208 = sbr.rel (0) target = $region69
    $region68: #{_fused_forward.1} parent=1 // pred_region
      _
    $region69: #{_fused_forward.1} parent=1 // pred_fallthru
      _
    // Predicated region
    $region70: #{_fused_forward.1} parent=1 // pred_check
      _
    $region71: #{_fused_forward.1} parent=1 // pred_check_branch
      %1210 = sbr.rel (0) target = $region73
    $region72: #{_fused_forward.1} parent=1 // pred_region
      _
    $region73: #{_fused_forward.1} parent=1 // pred_fallthru
      _
    // Predicated region
    $region74: #{_fused_forward.1} parent=1 // pred_check
      _
    $region75: #{_fused_forward.1} parent=1 // pred_check_branch
      %1212 = sbr.rel (0) target = $region77
    $region76: #{_fused_forward.1} parent=1 // pred_region
      _
    $region77: #{_fused_forward.1} parent=1 // pred_fallthru
      _
    // Predicated region
    $region78: #{_fused_forward.1} parent=1 // pred_check
      _
    $region79: #{_fused_forward.1} parent=1 // pred_check_branch
      %1214 = sbr.rel (0) target = $region81
    $region80: #{_fused_forward.1} parent=1 // pred_region
      %1215 = dma.done [#allocation3], 128
    $region81: #{_fused_forward.1} parent=1 // pred_fallthru
      _
    // Predicated region
    $region82: #{_fused_forward.1} parent=1 // pred_check
      _
    $region83: #{_fused_forward.1} parent=1 // pred_check_branch
      %1217 = sbr.rel (0) target = $region85
    $region84: #{_fused_forward.1} parent=1 // pred_region
      _
    $region85: #{_fused_forward.1} parent=1 // pred_fallthru
      _
    %1218 = vsyncpa [#allocation3], 1

</llo_original>
